<compile_context>
chip_gen: v6e
topology: v6e:2x2x1
jax: 0.10.0
libtpu: 0.0.40
codegen_flags: <defaults>
</compile_context>

<pallas_src>
import functools
import math

import jax
import jax.numpy as jnp
from jax import lax
from jax.experimental import pallas as pl
from jax.experimental.pallas import tpu as pltpu

LN_EPS = 1e-5  # PyTorch nn.LayerNorm default


# ---------------------------------------------------------------------------
# relative-position indices (pure index math, content independent) -> wrapper
# ---------------------------------------------------------------------------
def get_rel_indices(num_patches: int) -> jnp.ndarray:
    img = int(num_patches ** 0.5)
    ind = jnp.arange(img)[None, :] - jnp.arange(img)[:, None]            # [img, img]
    indx = jnp.tile(ind, (img, img))                                     # [N, N]
    indy = jnp.repeat(jnp.repeat(ind, img, axis=0), img, axis=1)         # [N, N]
    indd = indx ** 2 + indy ** 2
    return jnp.stack([indx, indy, indd], axis=-1).astype(jnp.float32)    # [N, N, 3]


# ---------------------------------------------------------------------------
# Pallas kernel: one batch tile (Bt elements) per grid step.
# ---------------------------------------------------------------------------
def _block_kernel(x_ref, posg_ref, omg_ref, ln1g_ref, ln1b_ref,
                  qkvw_ref, projw_ref, projb_ref,
                  ln2g_ref, ln2b_ref, fc1w_ref, fc1b_ref, fc2w_ref, fc2b_ref,
                  out_ref, *, num_heads, head_dim, batch_tile):
    H, hd, Bt = num_heads, head_dim, batch_tile
    cd = qkvw_ref.dtype                              # MXU operand dtype (bf16 or f32)

    x = x_ref[...]                                   # [Bt, N, C]
    _, N, C = x.shape
    M = Bt * N
    xm = x.reshape(M, C).astype(jnp.float32)

    # ---------------- LayerNorm 1 (f32) ----------------
    mu = jnp.mean(xm, axis=-1, keepdims=True)
    var = jnp.mean(jnp.square(xm - mu), axis=-1, keepdims=True)
    xn = (xm - mu) * lax.rsqrt(var + LN_EPS) * ln1g_ref[...] + ln1b_ref[...]
    xn_c = xn.astype(cd)

    qkvw = qkvw_ref[...]                             # [3C, C]   (q rows pre-scaled)
    projw = projw_ref[...]                           # [C, C]    == torch proj_w.T
    posg = posg_ref[...].astype(jnp.float32)         # [Bt*H, N, N]  sigmoid(g)*softmax(pos)
    omg = omg_ref[...]                               # [Bt*H, 1, 1]  1 - sigmoid(g)

    # ---------------- GPSA ----------------
    # Fused q|k|v projection in transposed layout: z_b = W_qkv @ x_b^T -> [3C, N].
    # Channels land on the sublane axis so the per-head split is a free reshape.
    xn3 = xn_c.reshape(Bt, N, C)
    zs = [lax.dot_general(qkvw, xn3[b], (((1,), (1,)), ((), ())),
                          preferred_element_type=jnp.float32)
          for b in range(Bt)]
    z = (zs[0][None] if Bt == 1 else jnp.stack(zs, axis=0)).astype(cd)   # [Bt, 3C, N]
    q = z[:, :C, :].reshape(Bt * H, hd, N)
    k = z[:, C:2 * C, :].reshape(Bt * H, hd, N)
    v = z[:, 2 * C:, :].reshape(Bt * H, hd, N)

    # scores[g, n, m] = sum_d q[g, d, n] * k[g, d, m]   (scale folded into Wq)
    patch = lax.dot_general(q, k, (((1,), (1,)), ((0,), (0,))),
                            preferred_element_type=jnp.float32)          # [Bt*H, N, N]
    patch = jax.nn.softmax(patch, axis=-1)

    attn = omg * patch + posg                                            # gated mix
    attn = attn * pl.reciprocal(jnp.sum(attn, axis=-1, keepdims=True),
                                approx=True)                             # renorm

    # ho[g, d, n] = sum_m v[g, d, m] * attn[g, n, m]  -> [Bt*H, hd, N] -> [Bt, C, N]
    ho = lax.dot_general(v, attn.astype(cd), (((2,), (2,)), ((0,), (0,))),
                         preferred_element_type=jnp.float32)
    ho = ho.astype(cd).reshape(Bt, C, N)

    # output projection with a full-C contraction (head reduction folded in):
    # y_b[n, c] = sum_i ho_b[i, n] * projw[i, c]  -> lane-dense [N, C]
    ys = [lax.dot_general(ho[b], projw, (((0,), (0,)), ((), ())),
                          preferred_element_type=jnp.float32)
          for b in range(Bt)]
    y = ys[0] if Bt == 1 else jnp.concatenate(ys, axis=0)                # [M, C]

    x1 = xm + y + projb_ref[...]                                         # residual 1

    # ---------------- LayerNorm 2 + MLP on the flattened [Bt*N, C] slab ----------------
    mu2 = jnp.mean(x1, axis=-1, keepdims=True)
    var2 = jnp.mean(jnp.square(x1 - mu2), axis=-1, keepdims=True)
    xn2 = (x1 - mu2) * lax.rsqrt(var2 + LN_EPS) * ln2g_ref[...] + ln2b_ref[...]

    h1 = jnp.dot(xn2.astype(cd), fc1w_ref[...],
                 preferred_element_type=jnp.float32) + fc1b_ref[...]
    # exact (erf-based) GELU, matching torch.nn.GELU default
    h1 = 0.5 * h1 * (1.0 + lax.erf(h1 * jnp.float32(0.7071067811865476)))
    mlp = jnp.dot(h1.astype(cd), fc2w_ref[...],
                  preferred_element_type=jnp.float32) + fc2b_ref[...]

    out_ref[...] = (x1 + mlp).reshape(Bt, N, C).astype(out_ref.dtype)    # residual 2


# ---------------------------------------------------------------------------
# Wrapper: x-independent precompute, weight relayout, pallas_call
# ---------------------------------------------------------------------------
def block_pallas(x, p, num_heads, *, compute_dtype=jnp.bfloat16, batch_tile=1):
    B, N, C = x.shape
    H = num_heads
    hd = C // H
    hidden = p["fc1_w"].shape[0]
    scale = float(hd) ** -0.5
    bt = batch_tile if (batch_tile >= 1 and B % batch_tile == 0) else 1

    # -------- x-independent precompute (hoisted out of the kernel) --------
    rel = get_rel_indices(N)                                              # [N, N, 3]
    pos_logits = jnp.transpose(rel @ p["pos_w"].T + p["pos_b"], (2, 0, 1))  # [H, N, N]
    g = jax.nn.sigmoid(p["gating"]).astype(jnp.float32)                   # [H]
    pos_gated = g[:, None, None] * jax.nn.softmax(pos_logits, axis=-1)    # [H, N, N]
    one_minus_g = (1.0 - g).reshape(H, 1, 1)
    if bt > 1:   # replicate over the batch tile so the attention stays rank-3, loop-free
        pos_gated = jnp.tile(pos_gated, (bt, 1, 1))
        one_minus_g = jnp.tile(one_minus_g, (bt, 1, 1))
    pos_gated = pos_gated.astype(compute_dtype)

    # -------- weights: fused q|k|v (scale folded into q), proj^T, MLP^T --------
    wqkv = jnp.concatenate([p["qk_w"][:C] * scale, p["qk_w"][C:], p["v_w"]],
                           axis=0).astype(compute_dtype)                  # [3C, C]
    projw = p["proj_w"].T.astype(compute_dtype)                           # [C, C]
    fc1wT = p["fc1_w"].T.astype(compute_dtype)                            # [C, hidden]
    fc2wT = p["fc2_w"].T.astype(compute_dtype)                            # [hidden, C]

    def full(shape):
        nd = len(shape)
        return pl.BlockSpec(shape, lambda i, _nd=nd: (0,) * _nd)

    kernel = functools.partial(_block_kernel, num_heads=H, head_dim=hd, batch_tile=bt)

    # -------- advisory cost estimate --------
    flops = int(2 * B * N * (4 * C * C + 2 * N * C + 2 * C * hidden))
    transcendentals = int(B * (H * N * N + N * hidden))
    wbytes = jnp.dtype(compute_dtype).itemsize
    bytes_accessed = int(4 * 2 * B * N * C
                         + wbytes * (bt * H * N * N + 4 * C * C + 2 * C * hidden))

    # -------- VMEM budget derived from actual tile sizes, capped by hardware --------
    def nbytes(shape, dt):
        return math.prod(shape) * jnp.dtype(dt).itemsize
    est = (2 * 2 * nbytes((bt, N, C), x.dtype)                             # x + out, dbl-buffered
           + 2 * (nbytes((bt * H, N, N), compute_dtype)                    # pos-gate
                  + nbytes((3 * C, C), compute_dtype)                      # qkv weight
                  + nbytes((C, C), compute_dtype)                          # proj weight
                  + nbytes((C, hidden), compute_dtype)                     # fc1
                  + nbytes((hidden, C), compute_dtype))                    # fc2
           + 4 * bt * (3 * C * N + 2 * H * N * N + N * hidden + 6 * N * C)  # live f32 values
           + (1 << 20))
    try:
        phys_vmem = int(pltpu.get_tpu_info().vmem_capacity_bytes)
    except Exception:
        phys_vmem = 64 * 1024 * 1024
    vmem_limit = int(min(max(int(est * 1.5), 32 * 1024 * 1024), int(phys_vmem * 0.9)))

    return pl.pallas_call(
        kernel,
        out_shape=jax.ShapeDtypeStruct((B, N, C), x.dtype),
        grid_spec=pltpu.PrefetchScalarGridSpec(
            num_scalar_prefetch=0,
            grid=(B // bt,),
            in_specs=[
                pl.BlockSpec((bt, N, C), lambda i: (i, 0, 0)),   # x
                full((bt * H, N, N)),                  # sigmoid(g) * softmax(pos)
                full((bt * H, 1, 1)),                  # 1 - sigmoid(g)
                full((1, C)), full((1, C)),            # ln1 gamma / beta
                full((3 * C, C)),                      # fused q|k|v weight (q pre-scaled)
                full((C, C)),                          # proj weight^T
                full((1, C)),                          # proj bias
                full((1, C)), full((1, C)),            # ln2 gamma / beta
                full((C, hidden)), full((1, hidden)),  # fc1 weight^T, bias
                full((hidden, C)), full((1, C)),       # fc2 weight^T, bias
            ],
            out_specs=pl.BlockSpec((bt, N, C), lambda i: (i, 0, 0)),
        ),
        compiler_params=pltpu.CompilerParams(
            dimension_semantics=("parallel",),      # batch steps are independent
            vmem_limit_bytes=vmem_limit,
        ),
        cost_estimate=pl.CostEstimate(
            flops=flops, transcendentals=transcendentals,
            bytes_accessed=bytes_accessed),
    )(
        x, pos_gated, one_minus_g,
        p["ln1_g"].reshape(1, C), p["ln1_b"].reshape(1, C),
        wqkv, projw, p["proj_b"].reshape(1, C),
        p["ln2_g"].reshape(1, C), p["ln2_b"].reshape(1, C),
        fc1wT, p["fc1_b"].reshape(1, hidden),
        fc2wT, p["fc2_b"].reshape(1, C),
    )


# ---------------------------------------------------------------------------
# Pure-JAX reference (mirrors the PyTorch forward exactly), for verification
# ---------------------------------------------------------------------------
def block_ref(x, p, num_heads):
    B, N, C = x.shape
    hd = C // num_heads
    scale = float(hd) ** -0.5

    def ln(z, g, b):
        mu = z.mean(-1, keepdims=True)
        var = ((z - mu) ** 2).mean(-1, keepdims=True)
        return (z - mu) / jnp.sqrt(var + LN_EPS) * g + b

    xn = ln(x, p["ln1_g"], p["ln1_b"])
    qk = (xn @ p["qk_w"].T).reshape(B, N, 2, num_heads, hd).transpose(2, 0, 3, 1, 4)
    q, k = qk[0], qk[1]
    v = (xn @ p["v_w"].T).reshape(B, N, num_heads, hd).transpose(0, 2, 1, 3)

    rel = get_rel_indices(N)
    pos = jnp.transpose(rel @ p["pos_w"].T + p["pos_b"], (2, 0, 1))[None]   # [1,H,N,N]
    patch = jnp.einsum("bhnd,bhmd->bhnm", q, k) * scale
    patch = jax.nn.softmax(patch, axis=-1)
    poss = jax.nn.softmax(pos, axis=-1)
    g = jax.nn.sigmoid(p["gating"])[None, :, None, None]
    attn = (1.0 - g) * patch + g * poss
    attn = attn / attn.sum(-1, keepdims=True)
    ao = jnp.einsum("bhnm,bhmd->bhnd", attn, v).transpose(0, 2, 1, 3).reshape(B, N, C)
    ao = ao @ p["proj_w"].T + p["proj_b"]
    x1 = x + ao

    xn2 = ln(x1, p["ln2_g"], p["ln2_b"])
    h1 = xn2 @ p["fc1_w"].T + p["fc1_b"]
    h1 = 0.5 * h1 * (1.0 + lax.erf(h1 / jnp.sqrt(2.0)))
    mlp = h1 @ p["fc2_w"].T + p["fc2_b"]
    return x1 + mlp


# ---------------------------------------------------------------------------
def init_params(key, dim, num_heads, mlp_ratio=4.0):
    hidden = int(dim * mlp_ratio)
    ks = jax.random.split(key, 12)
    w = lambda k, shape, s=0.02: (s * jax.random.normal(k, shape)).astype(jnp.float32)
    return {
        "ln1_g": jnp.ones((dim,), jnp.float32) + w(ks[0], (dim,), 0.01),
        "ln1_b": w(ks[1], (dim,), 0.01),
        "qk_w": w(ks[2], (2 * dim, dim)),          # qkv_bias=False -> no bias
        "v_w": w(ks[3], (dim, dim)),
        "proj_w": w(ks[4], (dim, dim)),
        "proj_b": w(ks[5], (dim,), 0.01),
        "pos_w": w(ks[6], (num_heads, 3), 0.5),
        "pos_b": w(ks[7], (num_heads,), 0.1),
        "gating": jnp.ones((num_heads,), jnp.float32),   # nn.Parameter(torch.ones(H))
        "ln2_g": jnp.ones((dim,), jnp.float32) + w(ks[8], (dim,), 0.01),
        "ln2_b": w(ks[9], (dim,), 0.01),
        "fc1_w": w(ks[10], (hidden, dim)),
        "fc1_b": jnp.zeros((hidden,), jnp.float32),
        "fc2_w": w(ks[11], (dim, hidden)),
        "fc2_b": jnp.zeros((dim,), jnp.float32),
    }


if __name__ == "__main__":
    B, N, C, H = 2, 16, 64, 8          # N=16 -> 4x4 patch grid; head_dim = 8
    key = jax.random.PRNGKey(0)
    kx, kp = jax.random.split(key)
    x = jax.random.normal(kx, (B, N, C), dtype=jnp.float32)
    params = init_params(kp, C, H)

    ref = jax.block_until_ready(block_ref(x, params, H))

    # default path: bf16 MXU operands / f32 accumulation, one element per grid step
    out_bf = jax.block_until_ready(block_pallas(x, params, H))
    assert out_bf.shape == (B, N, C)
    err_bf = float(jnp.max(jnp.abs(out_bf - ref)))
    assert jnp.allclose(out_bf, ref, rtol=2e-2, atol=2e-2), f"bf16 max abs err {err_bf}"

    # f32 operand path (bit-closer parity with PyTorch)
    out_f32 = jax.block_until_ready(
        block_pallas(x, params, H, compute_dtype=jnp.float32))
    err = float(jnp.max(jnp.abs(out_f32 - ref)))
    assert jnp.allclose(out_f32, ref, rtol=1e-3, atol=1e-3), f"f32 max abs err {err}"

    # f32 path with two batch elements per grid step (exercises batch_tile > 1)
    out_bt2 = jax.block_until_ready(
        block_pallas(x, params, H, compute_dtype=jnp.float32, batch_tile=2))
    err2 = float(jnp.max(jnp.abs(out_bt2 - ref)))
    assert jnp.allclose(out_bt2, ref, rtol=1e-3, atol=1e-3), f"f32 bt=2 max abs err {err2}"

    print("KERNEL_OK")
</pallas_src>

<mosaic_0001>
module attributes {stable_mosaic.version = 11 : i64} {
  func.func @_block_kernel(%arg0: i32, %arg1: memref<1x16x64xf32, #tpu.memory_space<vmem>>, %arg2: memref<8x16x16xbf16, #tpu.memory_space<vmem>>, %arg3: memref<8x1x1xf32, #tpu.memory_space<vmem>>, %arg4: memref<1x64xf32, #tpu.memory_space<vmem>>, %arg5: memref<1x64xf32, #tpu.memory_space<vmem>>, %arg6: memref<192x64xbf16, #tpu.memory_space<vmem>>, %arg7: memref<64x64xbf16, #tpu.memory_space<vmem>>, %arg8: memref<1x64xf32, #tpu.memory_space<vmem>>, %arg9: memref<1x64xf32, #tpu.memory_space<vmem>>, %arg10: memref<1x64xf32, #tpu.memory_space<vmem>>, %arg11: memref<64x256xbf16, #tpu.memory_space<vmem>>, %arg12: memref<1x256xf32, #tpu.memory_space<vmem>>, %arg13: memref<256x64xbf16, #tpu.memory_space<vmem>>, %arg14: memref<1x64xf32, #tpu.memory_space<vmem>>, %arg15: memref<1x16x64xf32, #tpu.memory_space<vmem>>) attributes {dimension_semantics = [#tpu.dimension_semantics<parallel>], iteration_bounds = array<i64: 2>, scalar_prefetch = 0 : i64, scratch_operands = 0 : i64, tpu.core_type = #tpu.core_type<tc>, window_params = [{transform_indices = @transform_0, window_bounds = array<i64: 1, 16, 64>}, {pipeline_mode = #tpu.pipeline_mode<synchronous>, transform_indices = @transform_1, window_bounds = array<i64: 8, 16, 16>}, {pipeline_mode = #tpu.pipeline_mode<synchronous>, transform_indices = @transform_2, window_bounds = array<i64: 8, 1, 1>}, {pipeline_mode = #tpu.pipeline_mode<synchronous>, transform_indices = @transform_3, window_bounds = array<i64: 1, 64>}, {pipeline_mode = #tpu.pipeline_mode<synchronous>, transform_indices = @transform_4, window_bounds = array<i64: 1, 64>}, {pipeline_mode = #tpu.pipeline_mode<synchronous>, transform_indices = @transform_5, window_bounds = array<i64: 192, 64>}, {pipeline_mode = #tpu.pipeline_mode<synchronous>, transform_indices = @transform_6, window_bounds = array<i64: 64, 64>}, {pipeline_mode = #tpu.pipeline_mode<synchronous>, transform_indices = @transform_7, window_bounds = array<i64: 1, 64>}, {pipeline_mode = #tpu.pipeline_mode<synchronous>, transform_indices = @transform_8, window_bounds = array<i64: 1, 64>}, {pipeline_mode = #tpu.pipeline_mode<synchronous>, transform_indices = @transform_9, window_bounds = array<i64: 1, 64>}, {pipeline_mode = #tpu.pipeline_mode<synchronous>, transform_indices = @transform_10, window_bounds = array<i64: 64, 256>}, {pipeline_mode = #tpu.pipeline_mode<synchronous>, transform_indices = @transform_11, window_bounds = array<i64: 1, 256>}, {pipeline_mode = #tpu.pipeline_mode<synchronous>, transform_indices = @transform_12, window_bounds = array<i64: 256, 64>}, {pipeline_mode = #tpu.pipeline_mode<synchronous>, transform_indices = @transform_13, window_bounds = array<i64: 1, 64>}, {transform_indices = @transform_14, window_bounds = array<i64: 1, 16, 64>}]} {
    %c0 = arith.constant 0 : index
    %c0_0 = arith.constant 0 : index
    %c0_1 = arith.constant 0 : index
    %0 = vector.load %arg1[%c0, %c0_0, %c0_1] : memref<1x16x64xf32, #tpu.memory_space<vmem>>, vector<1x16x64xf32>
    %1 = vector.shape_cast %0 : vector<1x16x64xf32> to vector<16x64xf32>
    %cst = arith.constant dense<0.000000e+00> : vector<16xf32>
    %2 = vector.multi_reduction <add>, %1, %cst [1] : vector<16x64xf32> to vector<16xf32>
    %3 = vector.shape_cast %2 : vector<16xf32> to vector<16x1xf32>
    %cst_2 = arith.constant 6.400000e+01 : f32
    %4 = vector.broadcast %cst_2 : f32 to vector<16x1xf32>
    %5 = arith.divf %3, %4 : vector<16x1xf32>
    %6 = vector.broadcast %5 : vector<16x1xf32> to vector<16x64xf32>
    %7 = arith.subf %1, %6 : vector<16x64xf32>
    %8 = arith.mulf %7, %7 : vector<16x64xf32>
    %cst_3 = arith.constant dense<0.000000e+00> : vector<16xf32>
    %9 = vector.multi_reduction <add>, %8, %cst_3 [1] : vector<16x64xf32> to vector<16xf32>
    %10 = vector.shape_cast %9 : vector<16xf32> to vector<16x1xf32>
    %cst_4 = arith.constant 6.400000e+01 : f32
    %11 = vector.broadcast %cst_4 : f32 to vector<16x1xf32>
    %12 = arith.divf %10, %11 : vector<16x1xf32>
    %13 = vector.broadcast %5 : vector<16x1xf32> to vector<16x64xf32>
    %14 = arith.subf %1, %13 : vector<16x64xf32>
    %cst_5 = arith.constant 9.99999974E-6 : f32
    %15 = vector.broadcast %cst_5 : f32 to vector<16x1xf32>
    %16 = arith.addf %12, %15 : vector<16x1xf32>
    %17 = math.rsqrt %16 : vector<16x1xf32>
    %18 = vector.broadcast %17 : vector<16x1xf32> to vector<16x64xf32>
    %19 = arith.mulf %14, %18 : vector<16x64xf32>
    %c0_6 = arith.constant 0 : index
    %c0_7 = arith.constant 0 : index
    %20 = vector.load %arg4[%c0_6, %c0_7] : memref<1x64xf32, #tpu.memory_space<vmem>>, vector<1x64xf32>
    %21 = vector.broadcast %20 : vector<1x64xf32> to vector<16x64xf32>
    %22 = arith.mulf %19, %21 : vector<16x64xf32>
    %c0_8 = arith.constant 0 : index
    %c0_9 = arith.constant 0 : index
    %23 = vector.load %arg5[%c0_8, %c0_9] : memref<1x64xf32, #tpu.memory_space<vmem>>, vector<1x64xf32>
    %24 = vector.broadcast %23 : vector<1x64xf32> to vector<16x64xf32>
    %25 = arith.addf %22, %24 : vector<16x64xf32>
    %26 = arith.truncf %25 : vector<16x64xf32> to vector<16x64xbf16>
    %c0_10 = arith.constant 0 : index
    %c0_11 = arith.constant 0 : index
    %27 = vector.load %arg6[%c0_10, %c0_11] : memref<192x64xbf16, #tpu.memory_space<vmem>>, vector<192x64xbf16>
    %c0_12 = arith.constant 0 : index
    %c0_13 = arith.constant 0 : index
    %28 = vector.load %arg7[%c0_12, %c0_13] : memref<64x64xbf16, #tpu.memory_space<vmem>>, vector<64x64xbf16>
    %c0_14 = arith.constant 0 : index
    %c0_15 = arith.constant 0 : index
    %c0_16 = arith.constant 0 : index
    %29 = vector.load %arg2[%c0_14, %c0_15, %c0_16] : memref<8x16x16xbf16, #tpu.memory_space<vmem>>, vector<8x16x16xbf16>
    %30 = arith.extf %29 : vector<8x16x16xbf16> to vector<8x16x16xf32>
    %c0_17 = arith.constant 0 : index
    %c0_18 = arith.constant 0 : index
    %c0_19 = arith.constant 0 : index
    %31 = vector.load %arg3[%c0_17, %c0_18, %c0_19] : memref<8x1x1xf32, #tpu.memory_space<vmem>>, vector<8x1x1xf32>
    %32 = vector.shape_cast %26 : vector<16x64xbf16> to vector<1x16x64xbf16>
    %33 = vector.shape_cast %32 : vector<1x16x64xbf16> to vector<16x64xbf16>
    %cst_20 = arith.constant dense<0.000000e+00> : vector<192x16xf32>
    %34 = tpu.matmul %27, %33, %cst_20 {dimension_numbers = #tpu.dot_dimension_numbers<[1], [1], [0], [0], [0, 0, 1, 0], [], []>} : vector<192x64xbf16>, vector<16x64xbf16>, vector<192x16xf32> -> vector<192x16xf32>
    %35 = vector.shape_cast %34 : vector<192x16xf32> to vector<1x192x16xf32>
    %36 = arith.truncf %35 : vector<1x192x16xf32> to vector<1x192x16xbf16>
    %37 = vector.extract_strided_slice %36 {offsets = [0, 0, 0], sizes = [1, 64, 16], strides = [1, 1, 1]} : vector<1x192x16xbf16> to vector<1x64x16xbf16>
    %38 = vector.shape_cast %37 : vector<1x64x16xbf16> to vector<8x8x16xbf16>
    %39 = vector.extract_strided_slice %36 {offsets = [0, 64, 0], sizes = [1, 64, 16], strides = [1, 1, 1]} : vector<1x192x16xbf16> to vector<1x64x16xbf16>
    %40 = vector.shape_cast %39 : vector<1x64x16xbf16> to vector<8x8x16xbf16>
    %41 = vector.extract_strided_slice %36 {offsets = [0, 128, 0], sizes = [1, 64, 16], strides = [1, 1, 1]} : vector<1x192x16xbf16> to vector<1x64x16xbf16>
    %42 = vector.shape_cast %41 : vector<1x64x16xbf16> to vector<8x8x16xbf16>
    %cst_21 = arith.constant dense<0.000000e+00> : vector<8x16x16xf32>
    %43 = tpu.matmul %38, %40, %cst_21 {dimension_numbers = #tpu.dot_dimension_numbers<[1], [1], [2], [2], [0, 0, 0, 2, 1, 2], [0], [0]>} : vector<8x8x16xbf16>, vector<8x8x16xbf16>, vector<8x16x16xf32> -> vector<8x16x16xf32>
    %cst_22 = arith.constant dense<0xFF800000> : vector<8x16xf32>
    %44 = vector.multi_reduction <maximumf>, %43, %cst_22 [2] : vector<8x16x16xf32> to vector<8x16xf32>
    %cst_23 = arith.constant 0xFF800000 : f32
    %45 = vector.broadcast %cst_23 : f32 to vector<8x16xf32>
    %46 = arith.maximumf %45, %44 : vector<8x16xf32>
    %47 = vector.shape_cast %46 : vector<8x16xf32> to vector<8x16x1xf32>
    %48 = vector.broadcast %47 : vector<8x16x1xf32> to vector<8x16x16xf32>
    %49 = arith.subf %43, %48 : vector<8x16x16xf32>
    %50 = math.exp %49 : vector<8x16x16xf32>
    %cst_24 = arith.constant dense<0.000000e+00> : vector<8x16xf32>
    %51 = vector.multi_reduction <add>, %50, %cst_24 [2] : vector<8x16x16xf32> to vector<8x16xf32>
    %52 = vector.shape_cast %51 : vector<8x16xf32> to vector<8x16x1xf32>
    %53 = vector.broadcast %52 : vector<8x16x1xf32> to vector<8x16x16xf32>
    %54 = arith.divf %50, %53 : vector<8x16x16xf32>
    %55 = vector.broadcast %31 : vector<8x1x1xf32> to vector<8x16x16xf32>
    %56 = arith.mulf %55, %54 : vector<8x16x16xf32>
    %57 = arith.addf %56, %30 : vector<8x16x16xf32>
    %cst_25 = arith.constant dense<0.000000e+00> : vector<8x16xf32>
    %58 = vector.multi_reduction <add>, %57, %cst_25 [2] : vector<8x16x16xf32> to vector<8x16xf32>
    %59 = vector.shape_cast %58 : vector<8x16xf32> to vector<8x16x1xf32>
    %60 = tpu.reciprocal %59 {approx = true} : vector<8x16x1xf32> -> vector<8x16x1xf32>
    %61 = vector.broadcast %60 : vector<8x16x1xf32> to vector<8x16x16xf32>
    %62 = arith.mulf %57, %61 : vector<8x16x16xf32>
    %63 = arith.truncf %62 : vector<8x16x16xf32> to vector<8x16x16xbf16>
    %cst_26 = arith.constant dense<0.000000e+00> : vector<8x8x16xf32>
    %64 = tpu.matmul %42, %63, %cst_26 {dimension_numbers = #tpu.dot_dimension_numbers<[2], [2], [1], [1], [0, 0, 0, 1, 1, 1], [0], [0]>} : vector<8x8x16xbf16>, vector<8x16x16xbf16>, vector<8x8x16xf32> -> vector<8x8x16xf32>
    %65 = arith.truncf %64 : vector<8x8x16xf32> to vector<8x8x16xbf16>
    %66 = vector.shape_cast %65 : vector<8x8x16xbf16> to vector<1x64x16xbf16>
    %67 = vector.shape_cast %66 : vector<1x64x16xbf16> to vector<64x16xbf16>
    %cst_27 = arith.constant dense<0.000000e+00> : vector<16x64xf32>
    %68 = tpu.matmul %67, %28, %cst_27 {dimension_numbers = #tpu.dot_dimension_numbers<[0], [0], [1], [1], [0, 1, 1, 1], [], []>} : vector<64x16xbf16>, vector<64x64xbf16>, vector<16x64xf32> -> vector<16x64xf32>
    %69 = arith.addf %1, %68 : vector<16x64xf32>
    %c0_28 = arith.constant 0 : index
    %c0_29 = arith.constant 0 : index
    %70 = vector.load %arg8[%c0_28, %c0_29] : memref<1x64xf32, #tpu.memory_space<vmem>>, vector<1x64xf32>
    %71 = vector.broadcast %70 : vector<1x64xf32> to vector<16x64xf32>
    %72 = arith.addf %69, %71 : vector<16x64xf32>
    %cst_30 = arith.constant dense<0.000000e+00> : vector<16xf32>
    %73 = vector.multi_reduction <add>, %72, %cst_30 [1] : vector<16x64xf32> to vector<16xf32>
    %74 = vector.shape_cast %73 : vector<16xf32> to vector<16x1xf32>
    %cst_31 = arith.constant 6.400000e+01 : f32
    %75 = vector.broadcast %cst_31 : f32 to vector<16x1xf32>
    %76 = arith.divf %74, %75 : vector<16x1xf32>
    %77 = vector.broadcast %76 : vector<16x1xf32> to vector<16x64xf32>
    %78 = arith.subf %72, %77 : vector<16x64xf32>
    %79 = arith.mulf %78, %78 : vector<16x64xf32>
    %cst_32 = arith.constant dense<0.000000e+00> : vector<16xf32>
    %80 = vector.multi_reduction <add>, %79, %cst_32 [1] : vector<16x64xf32> to vector<16xf32>
    %81 = vector.shape_cast %80 : vector<16xf32> to vector<16x1xf32>
    %cst_33 = arith.constant 6.400000e+01 : f32
    %82 = vector.broadcast %cst_33 : f32 to vector<16x1xf32>
    %83 = arith.divf %81, %82 : vector<16x1xf32>
    %84 = vector.broadcast %76 : vector<16x1xf32> to vector<16x64xf32>
    %85 = arith.subf %72, %84 : vector<16x64xf32>
    %cst_34 = arith.constant 9.99999974E-6 : f32
    %86 = vector.broadcast %cst_34 : f32 to vector<16x1xf32>
    %87 = arith.addf %83, %86 : vector<16x1xf32>
    %88 = math.rsqrt %87 : vector<16x1xf32>
    %89 = vector.broadcast %88 : vector<16x1xf32> to vector<16x64xf32>
    %90 = arith.mulf %85, %89 : vector<16x64xf32>
    %c0_35 = arith.constant 0 : index
    %c0_36 = arith.constant 0 : index
    %91 = vector.load %arg9[%c0_35, %c0_36] : memref<1x64xf32, #tpu.memory_space<vmem>>, vector<1x64xf32>
    %92 = vector.broadcast %91 : vector<1x64xf32> to vector<16x64xf32>
    %93 = arith.mulf %90, %92 : vector<16x64xf32>
    %c0_37 = arith.constant 0 : index
    %c0_38 = arith.constant 0 : index
    %94 = vector.load %arg10[%c0_37, %c0_38] : memref<1x64xf32, #tpu.memory_space<vmem>>, vector<1x64xf32>
    %95 = vector.broadcast %94 : vector<1x64xf32> to vector<16x64xf32>
    %96 = arith.addf %93, %95 : vector<16x64xf32>
    %97 = arith.truncf %96 : vector<16x64xf32> to vector<16x64xbf16>
    %c0_39 = arith.constant 0 : index
    %c0_40 = arith.constant 0 : index
    %98 = vector.load %arg11[%c0_39, %c0_40] : memref<64x256xbf16, #tpu.memory_space<vmem>>, vector<64x256xbf16>
    %cst_41 = arith.constant dense<0.000000e+00> : vector<16x256xf32>
    %99 = tpu.matmul %97, %98, %cst_41 {dimension_numbers = #tpu.dot_dimension_numbers<[1], [0], [0], [1], [0, 0, 1, 1], [], []>} : vector<16x64xbf16>, vector<64x256xbf16>, vector<16x256xf32> -> vector<16x256xf32>
    %c0_42 = arith.constant 0 : index
    %c0_43 = arith.constant 0 : index
    %100 = vector.load %arg12[%c0_42, %c0_43] : memref<1x256xf32, #tpu.memory_space<vmem>>, vector<1x256xf32>
    %101 = vector.broadcast %100 : vector<1x256xf32> to vector<16x256xf32>
    %102 = arith.addf %99, %101 : vector<16x256xf32>
    %cst_44 = arith.constant 5.000000e-01 : f32
    %103 = vector.broadcast %cst_44 : f32 to vector<16x256xf32>
    %104 = arith.mulf %103, %102 : vector<16x256xf32>
    %cst_45 = arith.constant 0.707106769 : f32
    %105 = vector.broadcast %cst_45 : f32 to vector<16x256xf32>
    %106 = arith.mulf %102, %105 : vector<16x256xf32>
    %107 = math.erf %106 : vector<16x256xf32>
    %cst_46 = arith.constant 1.000000e+00 : f32
    %108 = vector.broadcast %cst_46 : f32 to vector<16x256xf32>
    %109 = arith.addf %108, %107 : vector<16x256xf32>
    %110 = arith.mulf %104, %109 : vector<16x256xf32>
    %111 = arith.truncf %110 : vector<16x256xf32> to vector<16x256xbf16>
    %c0_47 = arith.constant 0 : index
    %c0_48 = arith.constant 0 : index
    %112 = vector.load %arg13[%c0_47, %c0_48] : memref<256x64xbf16, #tpu.memory_space<vmem>>, vector<256x64xbf16>
    %cst_49 = arith.constant dense<0.000000e+00> : vector<16x64xf32>
    %113 = tpu.matmul %111, %112, %cst_49 {dimension_numbers = #tpu.dot_dimension_numbers<[1], [0], [0], [1], [0, 0, 1, 1], [], []>} : vector<16x256xbf16>, vector<256x64xbf16>, vector<16x64xf32> -> vector<16x64xf32>
    %c0_50 = arith.constant 0 : index
    %c0_51 = arith.constant 0 : index
    %114 = vector.load %arg14[%c0_50, %c0_51] : memref<1x64xf32, #tpu.memory_space<vmem>>, vector<1x64xf32>
    %115 = vector.broadcast %114 : vector<1x64xf32> to vector<16x64xf32>
    %116 = arith.addf %113, %115 : vector<16x64xf32>
    %117 = arith.addf %72, %116 : vector<16x64xf32>
    %118 = vector.shape_cast %117 : vector<16x64xf32> to vector<1x16x64xf32>
    %c0_52 = arith.constant 0 : index
    %c0_53 = arith.constant 0 : index
    %c0_54 = arith.constant 0 : index
    %119 = vector.load %arg15[%c0_52, %c0_53, %c0_54] : memref<1x16x64xf32, #tpu.memory_space<vmem>>, vector<1x16x64xf32>
    tpu.vector_store %arg15[%c0_52, %c0_53, %c0_54], %118 {strides = array<i32>} : memref<1x16x64xf32, #tpu.memory_space<vmem>>, vector<1x16x64xf32>,
    return
  }
  func.func @transform_0(%arg0: i32) -> (i32, i32, i32) {
    %c0_i32 = arith.constant 0 : i32
    %c0_i32_0 = arith.constant 0 : i32
    %c0_i32_1 = arith.constant 0 : i32
    return %arg0, %c0_i32, %c0_i32_0 : i32, i32, i32
  }
  func.func @transform_1(%arg0: i32) -> (i32, i32, i32) {
    %c0_i32 = arith.constant 0 : i32
    %c0_i32_0 = arith.constant 0 : i32
    %c0_i32_1 = arith.constant 0 : i32
    %c0_i32_2 = arith.constant 0 : i32
    return %c0_i32, %c0_i32_0, %c0_i32_1 : i32, i32, i32
  }
  func.func @transform_2(%arg0: i32) -> (i32, i32, i32) {
    %c0_i32 = arith.constant 0 : i32
    %c0_i32_0 = arith.constant 0 : i32
    %c0_i32_1 = arith.constant 0 : i32
    %c0_i32_2 = arith.constant 0 : i32
    return %c0_i32, %c0_i32_0, %c0_i32_1 : i32, i32, i32
  }
  func.func @transform_3(%arg0: i32) -> (i32, i32) {
    %c0_i32 = arith.constant 0 : i32
    %c0_i32_0 = arith.constant 0 : i32
    %c0_i32_1 = arith.constant 0 : i32
    return %c0_i32, %c0_i32_0 : i32, i32
  }
  func.func @transform_4(%arg0: i32) -> (i32, i32) {
    %c0_i32 = arith.constant 0 : i32
    %c0_i32_0 = arith.constant 0 : i32
    %c0_i32_1 = arith.constant 0 : i32
    return %c0_i32, %c0_i32_0 : i32, i32
  }
  func.func @transform_5(%arg0: i32) -> (i32, i32) {
    %c0_i32 = arith.constant 0 : i32
    %c0_i32_0 = arith.constant 0 : i32
    %c0_i32_1 = arith.constant 0 : i32
    return %c0_i32, %c0_i32_0 : i32, i32
  }
  func.func @transform_6(%arg0: i32) -> (i32, i32) {
    %c0_i32 = arith.constant 0 : i32
    %c0_i32_0 = arith.constant 0 : i32
    %c0_i32_1 = arith.constant 0 : i32
    return %c0_i32, %c0_i32_0 : i32, i32
  }
  func.func @transform_7(%arg0: i32) -> (i32, i32) {
    %c0_i32 = arith.constant 0 : i32
    %c0_i32_0 = arith.constant 0 : i32
    %c0_i32_1 = arith.constant 0 : i32
    return %c0_i32, %c0_i32_0 : i32, i32
  }
  func.func @transform_8(%arg0: i32) -> (i32, i32) {
    %c0_i32 = arith.constant 0 : i32
    %c0_i32_0 = arith.constant 0 : i32
    %c0_i32_1 = arith.constant 0 : i32
    return %c0_i32, %c0_i32_0 : i32, i32
  }
  func.func @transform_9(%arg0: i32) -> (i32, i32) {
    %c0_i32 = arith.constant 0 : i32
    %c0_i32_0 = arith.constant 0 : i32
    %c0_i32_1 = arith.constant 0 : i32
    return %c0_i32, %c0_i32_0 : i32, i32
  }
  func.func @transform_10(%arg0: i32) -> (i32, i32) {
    %c0_i32 = arith.constant 0 : i32
    %c0_i32_0 = arith.constant 0 : i32
    %c0_i32_1 = arith.constant 0 : i32
    return %c0_i32, %c0_i32_0 : i32, i32
  }
  func.func @transform_11(%arg0: i32) -> (i32, i32) {
    %c0_i32 = arith.constant 0 : i32
    %c0_i32_0 = arith.constant 0 : i32
    %c0_i32_1 = arith.constant 0 : i32
    return %c0_i32, %c0_i32_0 : i32, i32
  }
  func.func @transform_12(%arg0: i32) -> (i32, i32) {
    %c0_i32 = arith.constant 0 : i32
    %c0_i32_0 = arith.constant 0 : i32
    %c0_i32_1 = arith.constant 0 : i32
    return %c0_i32, %c0_i32_0 : i32, i32
  }
  func.func @transform_13(%arg0: i32) -> (i32, i32) {
    %c0_i32 = arith.constant 0 : i32
    %c0_i32_0 = arith.constant 0 : i32
    %c0_i32_1 = arith.constant 0 : i32
    return %c0_i32, %c0_i32_0 : i32, i32
  }
  func.func @transform_14(%arg0: i32) -> (i32, i32, i32) {
    %c0_i32 = arith.constant 0 : i32
    %c0_i32_0 = arith.constant 0 : i32
    %c0_i32_1 = arith.constant 0 : i32
    return %arg0, %c0_i32, %c0_i32_0 : i32, i32, i32
  }
}

</mosaic_0001>

<llo_original>
// kernel: tpu_custom_call.1
$region0: #{tpu_custom_call.1}
  #allocation0 [shape = 'u32[]', space=smem, size = 0x4, offset = 0x4, fixed_abs, tag = 'smem constant byte address 0x4 - core index']
  #allocation1 [shape = 'u32[144,128]{1,0:T(1,128)}', space=vmem, size = 0x12000, scoped, tag = 'internal scratch']
  %s0 = inlined_call_operand.vmem [shape: f32[2,16,64], index: 0, kind: input, shape index: {}]
  %s1 = inlined_call_operand.vmem [shape: bf16[8,16,16], index: 1, kind: input, shape index: {}]
  %s2 = inlined_call_operand.vmem [shape: f32[8,1,1], index: 2, kind: input, shape index: {}]
  %s3 = inlined_call_operand.vmem [shape: f32[1,64], index: 3, kind: input, shape index: {}]
  %s4 = inlined_call_operand.vmem [shape: f32[1,64], index: 4, kind: input, shape index: {}]
  %s5 = inlined_call_operand.vmem [shape: bf16[192,64], index: 5, kind: input, shape index: {}]
  %s6 = inlined_call_operand.vmem [shape: bf16[64,64], index: 6, kind: input, shape index: {}]
  %s7 = inlined_call_operand.vmem [shape: f32[1,64], index: 7, kind: input, shape index: {}]
  %s8 = inlined_call_operand.vmem [shape: f32[1,64], index: 8, kind: input, shape index: {}]
  %s9 = inlined_call_operand.vmem [shape: f32[1,64], index: 9, kind: input, shape index: {}]
  %s10 = inlined_call_operand.vmem [shape: bf16[64,256], index: 10, kind: input, shape index: {}]
  %s11 = inlined_call_operand.vmem [shape: f32[1,256], index: 11, kind: input, shape index: {}]
  %s12 = inlined_call_operand.vmem [shape: bf16[256,64], index: 12, kind: input, shape index: {}]
  %s13 = inlined_call_operand.vmem [shape: f32[1,64], index: 13, kind: input, shape index: {}]
  %s14 = inlined_call_operand.hbm [shape: f32[2,16,64], index: 14, kind: output, shape index: {}]
  %s15 = sld [smem:[#allocation0]]
  $region89: #{tpu_custom_call.1} parent=0
    _
  %s17 = ssub.s32 1, %s15
  %s18 = scalar_select 0, %s17, %s15
  $region1: #{tpu_custom_call.1} parent=0
    #allocation2 [shape = 'u8[16384]{0}', space=vmem, size = 0x4000, scoped, tag = 'output window, operand 0']
    #allocation3 [shape = 's32[2]{0}', space=sflag, size = 0x8, scoped, tag = 'scoped memory for tpu_custom_call.1']
    %19 = vsyncpa [#allocation3], 0
    %s20 = scalar_lea.sflag [#allocation3], 1
    %21 = vsyncpa %s20, 0
    loop: start=0, step=1, limit=4
    $region2: #{tpu_custom_call.1} parent=1 // loop_pre_header
      _
    $region3: #{tpu_custom_call.1} parent=1 // loop_header
      %s23 = sphi 0, %s27
      %p24 = scmp.ge.s32.totalorder %s23, 4
      %s33 = sphi 0, %s35
      %s36 = sphi 0, %s33
      %s37 = sphi 0, %s36
      %s53 = sphi 0, %s37
      %s57 = sphi 0, %s57
      %s59 = sphi 0, %s57
      %s60 = sphi 0, %s59
      %s74 = sphi 0, %s60
      %s78 = sphi 0, %s78
      %s80 = sphi 0, %s78
      %s81 = sphi 0, %s80
      %s95 = sphi 0, %s81
      %s99 = sphi 0, %s99
      %s101 = sphi 0, %s99
      %s102 = sphi 0, %s101
      %s116 = sphi 0, %s102
      %s120 = sphi 0, %s120
      %s122 = sphi 0, %s120
      %s123 = sphi 0, %s122
      %s137 = sphi 0, %s123
      %s141 = sphi 0, %s141
      %s143 = sphi 0, %s141
      %s144 = sphi 0, %s143
      %s158 = sphi 0, %s144
      %s162 = sphi 0, %s162
      %s164 = sphi 0, %s162
      %s165 = sphi 0, %s164
      %s179 = sphi 0, %s165
      %s183 = sphi 0, %s183
      %s185 = sphi 0, %s183
      %s186 = sphi 0, %s185
      %s200 = sphi 0, %s186
      %s204 = sphi 0, %s204
      %s206 = sphi 0, %s204
      %s207 = sphi 0, %s206
      %s221 = sphi 0, %s207
      %s225 = sphi 0, %s225
      %s227 = sphi 0, %s225
      %s228 = sphi 0, %s227
      %s242 = sphi 0, %s228
      %s246 = sphi 0, %s246
      %s248 = sphi 0, %s246
      %s249 = sphi 0, %s248
      %s263 = sphi 0, %s249
      %s267 = sphi 0, %s267
      %s269 = sphi 0, %s267
      %s270 = sphi 0, %s269
      %s284 = sphi 0, %s270
      %s288 = sphi 0, %s288
      %s290 = sphi 0, %s288
      %s291 = sphi 0, %s290
      %s305 = sphi 0, %s291
      %s309 = sphi 0, %s309
      %s311 = sphi 0, %s309
      %s312 = sphi 0, %s311
      %s326 = sphi 0, %s312
      %s332 = sphi 0, %s334
      %s335 = sphi 0, %s332
      %s336 = sphi 0, %s335
      %s352 = sphi 0, %s336
    $region4: #{tpu_custom_call.1} parent=1 // loop_header_branch
      %26 = sbr.rel (%p24) target = $region8
    $region5: #{tpu_custom_call.1} parent=1 // loop_body
      %s28 = ssub.s32 %s23, 1
      %s29 = ssub.s32 %s23, 2
      %s30 = sadd.s32 %s23, 1
      %s31 = ssub.s32 %s23, %s30
      %p32 = scmp.eq.s32.totalorder %s31, 0
      %s34 = sadd.s32 %s33, 1
      %s35 = scalar_select %p32, %s33, %s34
      %p38 = pneg %p32
      %p39 = scmp.eq.s32.totalorder %s23, 1
      %p40 = por %p38, %p39
      %p41 = scmp.ne.s32.totalorder %s33, %s36
      %p42 = scmp.eq.s32.totalorder %s23, 0
      %p43 = por %p41, %p42
      %p44 = scmp.ne.s32.totalorder %s33, %s36
      %p45 = scmp.eq.s32.totalorder %s28, 1
      %p46 = por %p44, %p45
      %p47 = scmp.ne.s32.totalorder %s36, %s37
      %p48 = scmp.eq.s32.totalorder %s28, 0
      %p49 = por %p47, %p48
      %p50 = scmp.ne.s32.totalorder %s36, %s37
      %p51 = scmp.eq.s32.totalorder %s29, 1
      %p52 = por %p50, %p51
      %p54 = scmp.ne.s32.totalorder %s37, %s53
      %p55 = scmp.eq.s32.totalorder %s29, 0
      %p56 = por %p54, %p55
      %s58 = sadd.s32 %s57, 1
      %p61 = scmp.eq.s32.totalorder %s23, 1
      %p62 = scmp.ne.s32.totalorder %s57, %s59
      %p63 = scmp.eq.s32.totalorder %s23, 0
      %p64 = por %p62, %p63
      %p65 = scmp.ne.s32.totalorder %s57, %s59
      %p66 = scmp.eq.s32.totalorder %s28, 1
      %p67 = por %p65, %p66
      %p68 = scmp.ne.s32.totalorder %s59, %s60
      %p69 = scmp.eq.s32.totalorder %s28, 0
      %p70 = por %p68, %p69
      %p71 = scmp.ne.s32.totalorder %s59, %s60
      %p72 = scmp.eq.s32.totalorder %s29, 1
      %p73 = por %p71, %p72
      %p75 = scmp.ne.s32.totalorder %s60, %s74
      %p76 = scmp.eq.s32.totalorder %s29, 0
      %p77 = por %p75, %p76
      %s79 = sadd.s32 %s78, 1
      %p82 = scmp.eq.s32.totalorder %s23, 1
      %p83 = scmp.ne.s32.totalorder %s78, %s80
      %p84 = scmp.eq.s32.totalorder %s23, 0
      %p85 = por %p83, %p84
      %p86 = scmp.ne.s32.totalorder %s78, %s80
      %p87 = scmp.eq.s32.totalorder %s28, 1
      %p88 = por %p86, %p87
      %p89 = scmp.ne.s32.totalorder %s80, %s81
      %p90 = scmp.eq.s32.totalorder %s28, 0
      %p91 = por %p89, %p90
      %p92 = scmp.ne.s32.totalorder %s80, %s81
      %p93 = scmp.eq.s32.totalorder %s29, 1
      %p94 = por %p92, %p93
      %p96 = scmp.ne.s32.totalorder %s81, %s95
      %p97 = scmp.eq.s32.totalorder %s29, 0
      %p98 = por %p96, %p97
      %s100 = sadd.s32 %s99, 1
      %p103 = scmp.eq.s32.totalorder %s23, 1
      %p104 = scmp.ne.s32.totalorder %s99, %s101
      %p105 = scmp.eq.s32.totalorder %s23, 0
      %p106 = por %p104, %p105
      %p107 = scmp.ne.s32.totalorder %s99, %s101
      %p108 = scmp.eq.s32.totalorder %s28, 1
      %p109 = por %p107, %p108
      %p110 = scmp.ne.s32.totalorder %s101, %s102
      %p111 = scmp.eq.s32.totalorder %s28, 0
      %p112 = por %p110, %p111
      %p113 = scmp.ne.s32.totalorder %s101, %s102
      %p114 = scmp.eq.s32.totalorder %s29, 1
      %p115 = por %p113, %p114
      %p117 = scmp.ne.s32.totalorder %s102, %s116
      %p118 = scmp.eq.s32.totalorder %s29, 0
      %p119 = por %p117, %p118
      %s121 = sadd.s32 %s120, 1
      %p124 = scmp.eq.s32.totalorder %s23, 1
      %p125 = scmp.ne.s32.totalorder %s120, %s122
      %p126 = scmp.eq.s32.totalorder %s23, 0
      %p127 = por %p125, %p126
      %p128 = scmp.ne.s32.totalorder %s120, %s122
      %p129 = scmp.eq.s32.totalorder %s28, 1
      %p130 = por %p128, %p129
      %p131 = scmp.ne.s32.totalorder %s122, %s123
      %p132 = scmp.eq.s32.totalorder %s28, 0
      %p133 = por %p131, %p132
      %p134 = scmp.ne.s32.totalorder %s122, %s123
      %p135 = scmp.eq.s32.totalorder %s29, 1
      %p136 = por %p134, %p135
      %p138 = scmp.ne.s32.totalorder %s123, %s137
      %p139 = scmp.eq.s32.totalorder %s29, 0
      %p140 = por %p138, %p139
      %s142 = sadd.s32 %s141, 1
      %p145 = scmp.eq.s32.totalorder %s23, 1
      %p146 = scmp.ne.s32.totalorder %s141, %s143
      %p147 = scmp.eq.s32.totalorder %s23, 0
      %p148 = por %p146, %p147
      %p149 = scmp.ne.s32.totalorder %s141, %s143
      %p150 = scmp.eq.s32.totalorder %s28, 1
      %p151 = por %p149, %p150
      %p152 = scmp.ne.s32.totalorder %s143, %s144
      %p153 = scmp.eq.s32.totalorder %s28, 0
      %p154 = por %p152, %p153
      %p155 = scmp.ne.s32.totalorder %s143, %s144
      %p156 = scmp.eq.s32.totalorder %s29, 1
      %p157 = por %p155, %p156
      %p159 = scmp.ne.s32.totalorder %s144, %s158
      %p160 = scmp.eq.s32.totalorder %s29, 0
      %p161 = por %p159, %p160
      %s163 = sadd.s32 %s162, 1
      %p166 = scmp.eq.s32.totalorder %s23, 1
      %p167 = scmp.ne.s32.totalorder %s162, %s164
      %p168 = scmp.eq.s32.totalorder %s23, 0
      %p169 = por %p167, %p168
      %p170 = scmp.ne.s32.totalorder %s162, %s164
      %p171 = scmp.eq.s32.totalorder %s28, 1
      %p172 = por %p170, %p171
      %p173 = scmp.ne.s32.totalorder %s164, %s165
      %p174 = scmp.eq.s32.totalorder %s28, 0
      %p175 = por %p173, %p174
      %p176 = scmp.ne.s32.totalorder %s164, %s165
      %p177 = scmp.eq.s32.totalorder %s29, 1
      %p178 = por %p176, %p177
      %p180 = scmp.ne.s32.totalorder %s165, %s179
      %p181 = scmp.eq.s32.totalorder %s29, 0
      %p182 = por %p180, %p181
      %s184 = sadd.s32 %s183, 1
      %p187 = scmp.eq.s32.totalorder %s23, 1
      %p188 = scmp.ne.s32.totalorder %s183, %s185
      %p189 = scmp.eq.s32.totalorder %s23, 0
      %p190 = por %p188, %p189
      %p191 = scmp.ne.s32.totalorder %s183, %s185
      %p192 = scmp.eq.s32.totalorder %s28, 1
      %p193 = por %p191, %p192
      %p194 = scmp.ne.s32.totalorder %s185, %s186
      %p195 = scmp.eq.s32.totalorder %s28, 0
      %p196 = por %p194, %p195
      %p197 = scmp.ne.s32.totalorder %s185, %s186
      %p198 = scmp.eq.s32.totalorder %s29, 1
      %p199 = por %p197, %p198
      %p201 = scmp.ne.s32.totalorder %s186, %s200
      %p202 = scmp.eq.s32.totalorder %s29, 0
      %p203 = por %p201, %p202
      %s205 = sadd.s32 %s204, 1
      %p208 = scmp.eq.s32.totalorder %s23, 1
      %p209 = scmp.ne.s32.totalorder %s204, %s206
      %p210 = scmp.eq.s32.totalorder %s23, 0
      %p211 = por %p209, %p210
      %p212 = scmp.ne.s32.totalorder %s204, %s206
      %p213 = scmp.eq.s32.totalorder %s28, 1
      %p214 = por %p212, %p213
      %p215 = scmp.ne.s32.totalorder %s206, %s207
      %p216 = scmp.eq.s32.totalorder %s28, 0
      %p217 = por %p215, %p216
      %p218 = scmp.ne.s32.totalorder %s206, %s207
      %p219 = scmp.eq.s32.totalorder %s29, 1
      %p220 = por %p218, %p219
      %p222 = scmp.ne.s32.totalorder %s207, %s221
      %p223 = scmp.eq.s32.totalorder %s29, 0
      %p224 = por %p222, %p223
      %s226 = sadd.s32 %s225, 1
      %p229 = scmp.eq.s32.totalorder %s23, 1
      %p230 = scmp.ne.s32.totalorder %s225, %s227
      %p231 = scmp.eq.s32.totalorder %s23, 0
      %p232 = por %p230, %p231
      %p233 = scmp.ne.s32.totalorder %s225, %s227
      %p234 = scmp.eq.s32.totalorder %s28, 1
      %p235 = por %p233, %p234
      %p236 = scmp.ne.s32.totalorder %s227, %s228
      %p237 = scmp.eq.s32.totalorder %s28, 0
      %p238 = por %p236, %p237
      %p239 = scmp.ne.s32.totalorder %s227, %s228
      %p240 = scmp.eq.s32.totalorder %s29, 1
      %p241 = por %p239, %p240
      %p243 = scmp.ne.s32.totalorder %s228, %s242
      %p244 = scmp.eq.s32.totalorder %s29, 0
      %p245 = por %p243, %p244
      %s247 = sadd.s32 %s246, 1
      %p250 = scmp.eq.s32.totalorder %s23, 1
      %p251 = scmp.ne.s32.totalorder %s246, %s248
      %p252 = scmp.eq.s32.totalorder %s23, 0
      %p253 = por %p251, %p252
      %p254 = scmp.ne.s32.totalorder %s246, %s248
      %p255 = scmp.eq.s32.totalorder %s28, 1
      %p256 = por %p254, %p255
      %p257 = scmp.ne.s32.totalorder %s248, %s249
      %p258 = scmp.eq.s32.totalorder %s28, 0
      %p259 = por %p257, %p258
      %p260 = scmp.ne.s32.totalorder %s248, %s249
      %p261 = scmp.eq.s32.totalorder %s29, 1
      %p262 = por %p260, %p261
      %p264 = scmp.ne.s32.totalorder %s249, %s263
      %p265 = scmp.eq.s32.totalorder %s29, 0
      %p266 = por %p264, %p265
      %s268 = sadd.s32 %s267, 1
      %p271 = scmp.eq.s32.totalorder %s23, 1
      %p272 = scmp.ne.s32.totalorder %s267, %s269
      %p273 = scmp.eq.s32.totalorder %s23, 0
      %p274 = por %p272, %p273
      %p275 = scmp.ne.s32.totalorder %s267, %s269
      %p276 = scmp.eq.s32.totalorder %s28, 1
      %p277 = por %p275, %p276
      %p278 = scmp.ne.s32.totalorder %s269, %s270
      %p279 = scmp.eq.s32.totalorder %s28, 0
      %p280 = por %p278, %p279
      %p281 = scmp.ne.s32.totalorder %s269, %s270
      %p282 = scmp.eq.s32.totalorder %s29, 1
      %p283 = por %p281, %p282
      %p285 = scmp.ne.s32.totalorder %s270, %s284
      %p286 = scmp.eq.s32.totalorder %s29, 0
      %p287 = por %p285, %p286
      %s289 = sadd.s32 %s288, 1
      %p292 = scmp.eq.s32.totalorder %s23, 1
      %p293 = scmp.ne.s32.totalorder %s288, %s290
      %p294 = scmp.eq.s32.totalorder %s23, 0
      %p295 = por %p293, %p294
      %p296 = scmp.ne.s32.totalorder %s288, %s290
      %p297 = scmp.eq.s32.totalorder %s28, 1
      %p298 = por %p296, %p297
      %p299 = scmp.ne.s32.totalorder %s290, %s291
      %p300 = scmp.eq.s32.totalorder %s28, 0
      %p301 = por %p299, %p300
      %p302 = scmp.ne.s32.totalorder %s290, %s291
      %p303 = scmp.eq.s32.totalorder %s29, 1
      %p304 = por %p302, %p303
      %p306 = scmp.ne.s32.totalorder %s291, %s305
      %p307 = scmp.eq.s32.totalorder %s29, 0
      %p308 = por %p306, %p307
      %s310 = sadd.s32 %s309, 1
      %p313 = scmp.eq.s32.totalorder %s23, 1
      %p314 = scmp.ne.s32.totalorder %s309, %s311
      %p315 = scmp.eq.s32.totalorder %s23, 0
      %p316 = por %p314, %p315
      %p317 = scmp.ne.s32.totalorder %s309, %s311
      %p318 = scmp.eq.s32.totalorder %s28, 1
      %p319 = por %p317, %p318
      %p320 = scmp.ne.s32.totalorder %s311, %s312
      %p321 = scmp.eq.s32.totalorder %s28, 0
      %p322 = por %p320, %p321
      %p323 = scmp.ne.s32.totalorder %s311, %s312
      %p324 = scmp.eq.s32.totalorder %s29, 1
      %p325 = por %p323, %p324
      %p327 = scmp.ne.s32.totalorder %s312, %s326
      %p328 = scmp.eq.s32.totalorder %s29, 0
      %p329 = por %p327, %p328
      %s330 = ssub.s32 %s23, %s30
      %p331 = scmp.eq.s32.totalorder %s330, 0
      %s333 = sadd.s32 %s332, 1
      %s334 = scalar_select %p331, %s332, %s333
      %p337 = pneg %p331
      %p338 = scmp.eq.s32.totalorder %s23, 1
      %p339 = por %p337, %p338
      %p340 = scmp.ne.s32.totalorder %s332, %s335
      %p341 = scmp.eq.s32.totalorder %s23, 0
      %p342 = por %p340, %p341
      %p343 = scmp.ne.s32.totalorder %s332, %s335
      %p344 = scmp.eq.s32.totalorder %s28, 1
      %p345 = por %p343, %p344
      %p346 = scmp.ne.s32.totalorder %s335, %s336
      %p347 = scmp.eq.s32.totalorder %s28, 0
      %p348 = por %p346, %p347
      %p349 = scmp.ne.s32.totalorder %s335, %s336
      %p350 = scmp.eq.s32.totalorder %s29, 1
      %p351 = por %p349, %p350
      %p353 = scmp.ne.s32.totalorder %s336, %s352
      %p354 = scmp.eq.s32.totalorder %s29, 0
      %p355 = por %p353, %p354
      %p356 = scmp.le.s32.totalorder 1, %s23
      %p357 = scmp.lt.s32.totalorder %s23, 3
      %p358 = pnand %p356, %p357
      %p359 = pneg %p358
      // Predicated region
      $region9: #{tpu_custom_call.1} parent=5 // pred_check
        _
      $region10: #{tpu_custom_call.1} parent=5 // pred_check_branch
        %361 = sbr.rel (%p358) target = $region12
      $region11: #{tpu_custom_call.1} parent=5 // pred_region
        %s362 = ssub.s32 %s23, 1
        // Predicated region
        $region13: #{tpu_custom_call.1} parent=11 // pred_check
          %p363 = pneg %p70
        $region14: #{tpu_custom_call.1} parent=11 // pred_check_branch
          %365 = sbr.rel (%p363) target = $region16
        $region15: #{tpu_custom_call.1} parent=11 // pred_region
          _
        $region16: #{tpu_custom_call.1} parent=11 // pred_fallthru
          _
        // Predicated region
        $region17: #{tpu_custom_call.1} parent=11 // pred_check
          %p366 = pneg %p91
        $region18: #{tpu_custom_call.1} parent=11 // pred_check_branch
          %368 = sbr.rel (%p366) target = $region20
        $region19: #{tpu_custom_call.1} parent=11 // pred_region
          _
        $region20: #{tpu_custom_call.1} parent=11 // pred_fallthru
          _
        // Predicated region
        $region21: #{tpu_custom_call.1} parent=11 // pred_check
          %p369 = pneg %p112
        $region22: #{tpu_custom_call.1} parent=11 // pred_check_branch
          %371 = sbr.rel (%p369) target = $region24
        $region23: #{tpu_custom_call.1} parent=11 // pred_region
          _
        $region24: #{tpu_custom_call.1} parent=11 // pred_fallthru
          _
        // Predicated region
        $region25: #{tpu_custom_call.1} parent=11 // pred_check
          %p372 = pneg %p133
        $region26: #{tpu_custom_call.1} parent=11 // pred_check_branch
          %374 = sbr.rel (%p372) target = $region28
        $region27: #{tpu_custom_call.1} parent=11 // pred_region
          _
        $region28: #{tpu_custom_call.1} parent=11 // pred_fallthru
          _
        // Predicated region
        $region29: #{tpu_custom_call.1} parent=11 // pred_check
          %p375 = pneg %p154
        $region30: #{tpu_custom_call.1} parent=11 // pred_check_branch
          %377 = sbr.rel (%p375) target = $region32
        $region31: #{tpu_custom_call.1} parent=11 // pred_region
          _
        $region32: #{tpu_custom_call.1} parent=11 // pred_fallthru
          _
        // Predicated region
        $region33: #{tpu_custom_call.1} parent=11 // pred_check
          %p378 = pneg %p175
        $region34: #{tpu_custom_call.1} parent=11 // pred_check_branch
          %380 = sbr.rel (%p378) target = $region36
        $region35: #{tpu_custom_call.1} parent=11 // pred_region
          _
        $region36: #{tpu_custom_call.1} parent=11 // pred_fallthru
          _
        // Predicated region
        $region37: #{tpu_custom_call.1} parent=11 // pred_check
          %p381 = pneg %p196
        $region38: #{tpu_custom_call.1} parent=11 // pred_check_branch
          %383 = sbr.rel (%p381) target = $region40
        $region39: #{tpu_custom_call.1} parent=11 // pred_region
          _
        $region40: #{tpu_custom_call.1} parent=11 // pred_fallthru
          _
        // Predicated region
        $region41: #{tpu_custom_call.1} parent=11 // pred_check
          %p384 = pneg %p217
        $region42: #{tpu_custom_call.1} parent=11 // pred_check_branch
          %386 = sbr.rel (%p384) target = $region44
        $region43: #{tpu_custom_call.1} parent=11 // pred_region
          _
        $region44: #{tpu_custom_call.1} parent=11 // pred_fallthru
          _
        // Predicated region
        $region45: #{tpu_custom_call.1} parent=11 // pred_check
          %p387 = pneg %p238
        $region46: #{tpu_custom_call.1} parent=11 // pred_check_branch
          %389 = sbr.rel (%p387) target = $region48
        $region47: #{tpu_custom_call.1} parent=11 // pred_region
          _
        $region48: #{tpu_custom_call.1} parent=11 // pred_fallthru
          _
        // Predicated region
        $region49: #{tpu_custom_call.1} parent=11 // pred_check
          %p390 = pneg %p259
        $region50: #{tpu_custom_call.1} parent=11 // pred_check_branch
          %392 = sbr.rel (%p390) target = $region52
        $region51: #{tpu_custom_call.1} parent=11 // pred_region
          _
        $region52: #{tpu_custom_call.1} parent=11 // pred_fallthru
          _
        // Predicated region
        $region53: #{tpu_custom_call.1} parent=11 // pred_check
          %p393 = pneg %p280
        $region54: #{tpu_custom_call.1} parent=11 // pred_check_branch
          %395 = sbr.rel (%p393) target = $region56
        $region55: #{tpu_custom_call.1} parent=11 // pred_region
          _
        $region56: #{tpu_custom_call.1} parent=11 // pred_fallthru
          _
        // Predicated region
        $region57: #{tpu_custom_call.1} parent=11 // pred_check
          %p396 = pneg %p301
        $region58: #{tpu_custom_call.1} parent=11 // pred_check_branch
          %398 = sbr.rel (%p396) target = $region60
        $region59: #{tpu_custom_call.1} parent=11 // pred_region
          _
        $region60: #{tpu_custom_call.1} parent=11 // pred_fallthru
          _
        // Predicated region
        $region61: #{tpu_custom_call.1} parent=11 // pred_check
          %p399 = pneg %p322
        $region62: #{tpu_custom_call.1} parent=11 // pred_check_branch
          %401 = sbr.rel (%p399) target = $region64
        $region63: #{tpu_custom_call.1} parent=11 // pred_region
          _
        $region64: #{tpu_custom_call.1} parent=11 // pred_fallthru
          _
      $region12: #{tpu_custom_call.1} parent=5 // pred_fallthru
        _
      %p402 = scmp.lt.s32.totalorder %s23, 2
      // Predicated region
      $region65: #{tpu_custom_call.1} parent=5 // pred_check
        %p403 = pneg %p402
      $region66: #{tpu_custom_call.1} parent=5 // pred_check_branch
        %405 = sbr.rel (%p403) target = $region68
      $region67: #{tpu_custom_call.1} parent=5 // pred_region
        // Predicated region
        $region69: #{tpu_custom_call.1} parent=67 // pred_check
          %p406 = pneg %p43
        $region70: #{tpu_custom_call.1} parent=67 // pred_check_branch
          %408 = sbr.rel (%p406) target = $region72
        $region71: #{tpu_custom_call.1} parent=67 // pred_region
          %p409 = scmp.lt.s32.totalorder %s23, 1
          %s410 = scalar_select %p409, %s23, 1
          %s411 = smul.addr %s410, 2
          %s412 = smul.addr %s411, 8
          %s413 = scalar_lea.vmem %s0, %s412
        $region72: #{tpu_custom_call.1} parent=67 // pred_fallthru
          _
      $region68: #{tpu_custom_call.1} parent=5 // pred_fallthru
        _
      %p414 = scmp.le.s32.totalorder 1, %s23
      %p415 = scmp.lt.s32.totalorder %s23, 3
      %p416 = pnand %p414, %p415
      %p417 = pneg %p416
      // Predicated region
      $region73: #{tpu_custom_call.1} parent=5 // pred_check
        _
      $region74: #{tpu_custom_call.1} parent=5 // pred_check_branch
        %419 = sbr.rel (%p416) target = $region76
      $region75: #{tpu_custom_call.1} parent=5 // pred_region
        %s420 = ssub.s32 %s23, 1
        %p421 = scmp.lt.s32.totalorder %s28, 1
        %s422 = scalar_select %p421, %s28, 1
        %s423 = smul.addr %s422, 2
        %s424 = smul.addr %s423, 8
        %s425 = scalar_lea.vmem %s0, %s424
        %p426 = pneg %p49
        %p427 = pneg %p46
        %p428 = pneg %p70
        %p429 = pneg %p67
        %p430 = pneg %p91
        %p431 = pneg %p88
        %p432 = pneg %p112
        %p433 = pneg %p109
        %p434 = pneg %p133
        %p435 = pneg %p130
        %p436 = pneg %p154
        %p437 = pneg %p151
        %p438 = pneg %p175
        %p439 = pneg %p172
        %p440 = pneg %p196
        %p441 = pneg %p193
        %p442 = pneg %p217
        %p443 = pneg %p214
        %p444 = pneg %p238
        %p445 = pneg %p235
        %p446 = pneg %p259
        %p447 = pneg %p256
        %p448 = pneg %p280
        %p449 = pneg %p277
        %p450 = pneg %p301
        %p451 = pneg %p298
        %p452 = pneg %p322
        %p453 = pneg %p319
        %p454 = pneg %p348
        %p455 = pneg %p345
        %s456 = sand.u32 %s335, 1
        %s457 = scalar_lea.sflag [#allocation3], %s456
        %s458 = sand.u32 %s335, 1
        %s459 = smul.addr %s458, 16
        %s460 = scalar_lea.vmem [#allocation2], %s459
        %p461 = scmp.lt.s32.totalorder %s28, 1
        %s462 = scalar_select %p461, %s28, 1
        %s463 = smul.addr %s462, 2
        %s464 = smul.addr %s463, 8
        %s465 = scalar_lea.vmem %s0, %s464
        %v467 = vld [vmem:[%s465] sm:$0xff]
        %v468 = vld [vmem:[%s465 + $0x8] sm:$0xff]
        %vm469 = vcmask 523264
        %v470 = vsel %vm469, %v467, 0.0
        %471 = vadd.xlane.f32.xlu0 %v470
        %v472 = vpop.xlane.xlu0 %471
        %v473 = vsel %vm469, %v468, 0.0
        %474 = vadd.xlane.f32.xlu0 %v473
        %v475 = vpop.xlane.xlu0 %474
        %v476 = vrcp.pop 64.0
        %v477 = vmul.f32 %v472, %v476
        %v478 = vmul.f32 %v475, %v476
        %v479 = vsub.f32 %v467, %v477
        %v480 = vsub.f32 %v468, %v478
        %v481 = vmul.f32 %v479, %v479
        %v482 = vmul.f32 %v480, %v480
        %v483 = vsel %vm469, %v481, 0.0
        %484 = vadd.xlane.f32.xlu0 %v483
        %v485 = vpop.xlane.xlu0 %484
        %v486 = vsel %vm469, %v482, 0.0
        %487 = vadd.xlane.f32.xlu0 %v486
        %v488 = vpop.xlane.xlu0 %487
        %v489 = vmul.f32 %v485, %v476
        %v490 = vmul.f32 %v488, %v476
        %v491 = vadd.f32 %v489, 1e-05
        %v492 = vadd.f32 %v490, 1e-05
        %v493 = vrsqrt.pop %v491
        %v494 = vrsqrt.pop %v492
        %v495 = vmul.f32 %v479, %v493
        %v496 = vmul.f32 %v480, %v494
        %v497 = vld [vmem:[%s3] sm:$0x1]
        %v499 = vlaneseq
        %v500 = vshrl.u32 %v499, 7
        %v501 = vsub.s32 0, %v500
        %v502 = vrot.slane %v497, %v501
        %v504 = vmul.f32 %v495, %v502
        %v505 = vmul.f32 %v496, %v502
        %v506 = vld [vmem:[%s4] sm:$0x1]
        %v508 = vlaneseq
        %v509 = vshrl.u32 %v508, 7
        %v510 = vsub.s32 0, %v509
        %v511 = vrot.slane %v506, %v510
        %v513 = vadd.f32 %v504, %v511
        %v514 = vadd.f32 %v505, %v511
        %v515 = vpack.c.bf16 %v514, %v513
        %v516 = vld [vmem:[%s5] sm:$0xf]
        %v517 = vld [vmem:[%s5 + $0x4] sm:$0xf]
        %v518 = vld [vmem:[%s5 + $0x8] sm:$0xf]
        %v519 = vld [vmem:[%s5 + $0xc] sm:$0xf]
        %v520 = vld [vmem:[%s5 + $0x10] sm:$0xf]
        %v521 = vld [vmem:[%s5 + $0x14] sm:$0xf]
        %v522 = vld [vmem:[%s5 + $0x18] sm:$0xf]
        %v523 = vld [vmem:[%s5 + $0x1c] sm:$0xf]
        %v524 = vld [vmem:[%s5 + $0x20] sm:$0xf]
        %v525 = vld [vmem:[%s5 + $0x24] sm:$0xf]
        %v526 = vld [vmem:[%s5 + $0x28] sm:$0xf]
        %v527 = vld [vmem:[%s5 + $0x2c] sm:$0xf]
        %v528 = vld [vmem:[%s5 + $0x30] sm:$0xf]
        %v529 = vld [vmem:[%s5 + $0x34] sm:$0xf]
        %v530 = vld [vmem:[%s5 + $0x38] sm:$0xf]
        %v531 = vld [vmem:[%s5 + $0x3c] sm:$0xf]
        %v532 = vld [vmem:[%s5 + $0x40] sm:$0xf]
        %v533 = vld [vmem:[%s5 + $0x44] sm:$0xf]
        %v534 = vld [vmem:[%s5 + $0x48] sm:$0xf]
        %v535 = vld [vmem:[%s5 + $0x4c] sm:$0xf]
        %v536 = vld [vmem:[%s5 + $0x50] sm:$0xf]
        %v537 = vld [vmem:[%s5 + $0x54] sm:$0xf]
        %v538 = vld [vmem:[%s5 + $0x58] sm:$0xf]
        %v539 = vld [vmem:[%s5 + $0x5c] sm:$0xf]
        %v540 = vld [vmem:[%s6] sm:$0xf]
        %v541 = vld [vmem:[%s6 + $0x4] sm:$0xf]
        %v542 = vld [vmem:[%s6 + $0x8] sm:$0xf]
        %v543 = vld [vmem:[%s6 + $0xc] sm:$0xf]
        %v544 = vld [vmem:[%s6 + $0x10] sm:$0xf]
        %v545 = vld [vmem:[%s6 + $0x14] sm:$0xf]
        %v546 = vld [vmem:[%s6 + $0x18] sm:$0xf]
        %v547 = vld [vmem:[%s6 + $0x1c] sm:$0xf]
        %v548 = vld [vmem:[%s1] sm:$0xf]
        %v549 = vld [vmem:[%s1 + $0x4] sm:$0xf]
        %v550 = vld [vmem:[%s1 + $0x8] sm:$0xf]
        %v551 = vld [vmem:[%s1 + $0xc] sm:$0xf]
        %v552 = vld [vmem:[%s1 + $0x10] sm:$0xf]
        %v553 = vld [vmem:[%s1 + $0x14] sm:$0xf]
        %v554 = vld [vmem:[%s1 + $0x18] sm:$0xf]
        %v555 = vld [vmem:[%s1 + $0x1c] sm:$0xf]
        %v556 = vld [vmem:[%s1 + $0x20] sm:$0xf]
        %v557 = vld [vmem:[%s1 + $0x24] sm:$0xf]
        %v558 = vld [vmem:[%s1 + $0x28] sm:$0xf]
        %v559 = vld [vmem:[%s1 + $0x2c] sm:$0xf]
        %v560 = vld [vmem:[%s1 + $0x30] sm:$0xf]
        %v561 = vld [vmem:[%s1 + $0x34] sm:$0xf]
        %v562 = vld [vmem:[%s1 + $0x38] sm:$0xf]
        %v563 = vld [vmem:[%s1 + $0x3c] sm:$0xf]
        %v564 = vunpack.c.l.bf16 %v548
        %v565 = vunpack.c.l.bf16 %v549
        %v566 = vunpack.c.l.bf16 %v550
        %v567 = vunpack.c.l.bf16 %v551
        %v568 = vunpack.c.l.bf16 %v552
        %v569 = vunpack.c.l.bf16 %v553
        %v570 = vunpack.c.l.bf16 %v554
        %v571 = vunpack.c.l.bf16 %v555
        %v572 = vunpack.c.l.bf16 %v556
        %v573 = vunpack.c.l.bf16 %v557
        %v574 = vunpack.c.l.bf16 %v558
        %v575 = vunpack.c.l.bf16 %v559
        %v576 = vunpack.c.l.bf16 %v560
        %v577 = vunpack.c.l.bf16 %v561
        %v578 = vunpack.c.l.bf16 %v562
        %v579 = vunpack.c.l.bf16 %v563
        %v580 = vld [vmem:[%s2] sm:$0x1]
        %v581 = vld [vmem:[%s2 + $0x1] sm:$0x1]
        %v582 = vld [vmem:[%s2 + $0x2] sm:$0x1]
        %v583 = vld [vmem:[%s2 + $0x3] sm:$0x1]
        %v584 = vld [vmem:[%s2 + $0x4] sm:$0x1]
        %v585 = vld [vmem:[%s2 + $0x5] sm:$0x1]
        %v586 = vld [vmem:[%s2 + $0x6] sm:$0x1]
        %v587 = vld [vmem:[%s2 + $0x7] sm:$0x1]
        %v612 = vunpack.c.l.b16 %v516
        %v613 = vunpack.c.l.b16 %v517
        %v614 = vunpack.c.l.b16 %v518
        %v615 = vunpack.c.l.b16 %v519
        %v616 = vunpack.c.l.b16 %v520
        %v617 = vunpack.c.l.b16 %v521
        %v618 = vunpack.c.l.b16 %v522
        %v619 = vunpack.c.l.b16 %v523
        %v620 = vunpack.c.l.b16 %v524
        %v621 = vunpack.c.l.b16 %v525
        %v622 = vunpack.c.l.b16 %v526
        %v623 = vunpack.c.l.b16 %v527
        %v624 = vunpack.c.l.b16 %v528
        %v625 = vunpack.c.l.b16 %v529
        %v626 = vunpack.c.l.b16 %v530
        %v627 = vunpack.c.l.b16 %v531
        %v628 = vunpack.c.l.b16 %v532
        %v629 = vunpack.c.l.b16 %v533
        %v630 = vunpack.c.l.b16 %v534
        %v631 = vunpack.c.l.b16 %v535
        %v632 = vunpack.c.l.b16 %v536
        %v633 = vunpack.c.l.b16 %v537
        %v634 = vunpack.c.l.b16 %v538
        %v635 = vunpack.c.l.b16 %v539
        %v636 = vpack.c.b16 %v613, %v612
        %v637 = vpack.c.b16 %v615, %v614
        %v638 = vpack.c.b16 %v617, %v616
        %v639 = vpack.c.b16 %v619, %v618
        %v640 = vpack.c.b16 %v621, %v620
        %v641 = vpack.c.b16 %v623, %v622
        %v642 = vpack.c.b16 %v625, %v624
        %v643 = vpack.c.b16 %v627, %v626
        %v644 = vpack.c.b16 %v629, %v628
        %v645 = vpack.c.b16 %v631, %v630
        %v646 = vpack.c.b16 %v633, %v632
        %v647 = vpack.c.b16 %v635, %v634
        %v649 = vsel %vm469, %v636, 0
        %v652 = vsel %vm469, %v637, 0
        %v655 = vsel %vm469, %v638, 0
        %v658 = vsel %vm469, %v639, 0
        %v661 = vsel %vm469, %v640, 0
        %v664 = vsel %vm469, %v641, 0
        %v667 = vsel %vm469, %v642, 0
        %v670 = vsel %vm469, %v643, 0
        %v673 = vsel %vm469, %v644, 0
        %v676 = vsel %vm469, %v645, 0
        %v679 = vsel %vm469, %v646, 0
        %v682 = vsel %vm469, %v647, 0
        %v685 = vsel %vm469, %v515, 0
        %687 = vmatprep.subr.bf16.mxu0 0
        %688 = vmatpush1.bf16.xpose.msra.mxu0 0
        %689 = vmatprep.subr.bf16.mxu0 0
        %690 = vmatpush1.bf16.xpose.msra.mxu0 0
        %691 = vmatprep.subr.bf16.mxu0 0
        %692 = vmatpush1.bf16.xpose.msra.mxu0 0
        %693 = vmatprep.subr.bf16.mxu0 0
        %694 = vmatpush1.bf16.xpose.msra.mxu0 0
        %695 = vmatprep.subr.bf16.mxu0 0
        %696 = vmatpush1.bf16.xpose.msra.mxu0 0
        %697 = vmatprep.subr.bf16.mxu0 0
        %698 = vmatpush1.bf16.xpose.msra.mxu0 0
        %699 = vmatprep.subr.bf16.mxu0 0
        %700 = vmatpush1.bf16.xpose.msra.mxu0 0
        %701 = vmatprep.subr.bf16.mxu0 0
        %702 = vmatpush1.bf16.xpose.msra.mxu0 %v685
        %703 = vmatprep.subr.bf16.mxu0 0
        %704 = vmatpush2.bf16.xpose.msra.mxu0 0
        %705 = vmatprep.subr.bf16.mxu0 0
        %706 = vmatpush2.bf16.xpose.msra.mxu0 0
        %707 = vmatprep.subr.bf16.mxu0 0
        %708 = vmatpush2.bf16.xpose.msra.mxu0 0
        %709 = vmatprep.subr.bf16.mxu0 0
        %710 = vmatpush2.bf16.xpose.msra.mxu0 0
        %711 = vmatprep.subr.bf16.mxu0 0
        %712 = vmatpush2.bf16.xpose.msra.mxu0 0
        %713 = vmatprep.subr.bf16.mxu0 0
        %714 = vmatpush2.bf16.xpose.msra.mxu0 0
        %715 = vmatprep.subr.bf16.mxu0 0
        %716 = vmatpush2.bf16.xpose.msra.mxu0 0
        %717 = vmatprep.subr.bf16.mxu0 0
        %718 = vmatpush2.bf16.xpose.msra.mxu0 0
        %719 = vmatprep.mubr.bf16.mxu0 0
        %720 = vmatmul.mubr.bf16.gmra.mxu0 %v649
        %v721 = vpop.f32.mrf.mxu0
        %v722 = vadd.f32 0.0, %v721
        %v723 = vpop.f32.mrf.mxu0
        %v724 = vpop.f32.mrf.mxu0
        %v725 = vadd.f32 0.0, %v724
        %v726 = vpop.f32.mrf.mxu0
        %727 = vmatprep.mubr.bf16.mxu0 0
        %728 = vmatmul.mubr.bf16.gmra.mxu0 %v652
        %v729 = vpop.f32.mrf.mxu0
        %v730 = vadd.f32 0.0, %v729
        %v731 = vpop.f32.mrf.mxu0
        %v732 = vpop.f32.mrf.mxu0
        %v733 = vadd.f32 0.0, %v732
        %v734 = vpop.f32.mrf.mxu0
        %735 = vmatprep.mubr.bf16.mxu0 0
        %736 = vmatmul.mubr.bf16.gmra.mxu0 %v655
        %v737 = vpop.f32.mrf.mxu0
        %v738 = vadd.f32 0.0, %v737
        %v739 = vpop.f32.mrf.mxu0
        %v740 = vpop.f32.mrf.mxu0
        %v741 = vadd.f32 0.0, %v740
        %v742 = vpop.f32.mrf.mxu0
        %743 = vmatprep.mubr.bf16.mxu0 0
        %744 = vmatmul.mubr.bf16.gmra.mxu0 %v658
        %v745 = vpop.f32.mrf.mxu0
        %v746 = vadd.f32 0.0, %v745
        %v747 = vpop.f32.mrf.mxu0
        %v748 = vpop.f32.mrf.mxu0
        %v749 = vadd.f32 0.0, %v748
        %v750 = vpop.f32.mrf.mxu0
        %751 = vmatprep.mubr.bf16.mxu0 0
        %752 = vmatmul.mubr.bf16.gmra.mxu0 %v661
        %v753 = vpop.f32.mrf.mxu0
        %v754 = vadd.f32 0.0, %v753
        %v755 = vpop.f32.mrf.mxu0
        %v756 = vpop.f32.mrf.mxu0
        %v757 = vadd.f32 0.0, %v756
        %v758 = vpop.f32.mrf.mxu0
        %759 = vmatprep.mubr.bf16.mxu0 0
        %760 = vmatmul.mubr.bf16.gmra.mxu0 %v664
        %v761 = vpop.f32.mrf.mxu0
        %v762 = vadd.f32 0.0, %v761
        %v763 = vpop.f32.mrf.mxu0
        %v764 = vpop.f32.mrf.mxu0
        %v765 = vadd.f32 0.0, %v764
        %v766 = vpop.f32.mrf.mxu0
        %767 = vmatprep.mubr.bf16.mxu0 0
        %768 = vmatmul.mubr.bf16.gmra.mxu0 %v667
        %v769 = vpop.f32.mrf.mxu0
        %v770 = vadd.f32 0.0, %v769
        %v771 = vpop.f32.mrf.mxu0
        %v772 = vpop.f32.mrf.mxu0
        %v773 = vadd.f32 0.0, %v772
        %v774 = vpop.f32.mrf.mxu0
        %775 = vmatprep.mubr.bf16.mxu0 0
        %776 = vmatmul.mubr.bf16.gmra.mxu0 %v670
        %v777 = vpop.f32.mrf.mxu0
        %v778 = vadd.f32 0.0, %v777
        %v779 = vpop.f32.mrf.mxu0
        %v780 = vpop.f32.mrf.mxu0
        %v781 = vadd.f32 0.0, %v780
        %v782 = vpop.f32.mrf.mxu0
        %783 = vmatprep.mubr.bf16.mxu0 0
        %784 = vmatmul.mubr.bf16.gmra.mxu0 %v673
        %v785 = vpop.f32.mrf.mxu0
        %v786 = vadd.f32 0.0, %v785
        %v787 = vpop.f32.mrf.mxu0
        %v788 = vpop.f32.mrf.mxu0
        %v789 = vadd.f32 0.0, %v788
        %v790 = vpop.f32.mrf.mxu0
        %791 = vmatprep.mubr.bf16.mxu0 0
        %792 = vmatmul.mubr.bf16.gmra.mxu0 %v676
        %v793 = vpop.f32.mrf.mxu0
        %v794 = vadd.f32 0.0, %v793
        %v795 = vpop.f32.mrf.mxu0
        %v796 = vpop.f32.mrf.mxu0
        %v797 = vadd.f32 0.0, %v796
        %v798 = vpop.f32.mrf.mxu0
        %799 = vmatprep.mubr.bf16.mxu0 0
        %800 = vmatmul.mubr.bf16.gmra.mxu0 %v679
        %v801 = vpop.f32.mrf.mxu0
        %v802 = vadd.f32 0.0, %v801
        %v803 = vpop.f32.mrf.mxu0
        %v804 = vpop.f32.mrf.mxu0
        %v805 = vadd.f32 0.0, %v804
        %v806 = vpop.f32.mrf.mxu0
        %807 = vmatprep.mubr.bf16.mxu0 0
        %808 = vmatmul.mubr.bf16.gmra.mxu0 %v682
        %v809 = vpop.f32.mrf.mxu0
        %v810 = vadd.f32 0.0, %v809
        %v811 = vpop.f32.mrf.mxu0
        %v812 = vpop.f32.mrf.mxu0
        %v813 = vadd.f32 0.0, %v812
        %v814 = vpop.f32.mrf.mxu0
        %815 = vdwg.mxu0
        %v816 = vpack.c.bf16 %v725, %v722
        %v817 = vpack.c.bf16 %v733, %v730
        %v818 = vpack.c.bf16 %v741, %v738
        %v819 = vpack.c.bf16 %v749, %v746
        %v820 = vpack.c.bf16 %v757, %v754
        %v821 = vpack.c.bf16 %v765, %v762
        %v822 = vpack.c.bf16 %v773, %v770
        %v823 = vpack.c.bf16 %v781, %v778
        %v824 = vpack.c.bf16 %v789, %v786
        %v825 = vpack.c.bf16 %v797, %v794
        %v826 = vpack.c.bf16 %v805, %v802
        %v827 = vpack.c.bf16 %v813, %v810
        %v832 = vunpack.c.l.b16 %v816
        %v833 = vunpack.c.h.b16 %v816
        %v834 = vunpack.c.l.b16 %v817
        %v835 = vunpack.c.h.b16 %v817
        %v836 = vunpack.c.l.b16 %v818
        %v837 = vunpack.c.h.b16 %v818
        %v838 = vunpack.c.l.b16 %v819
        %v839 = vunpack.c.h.b16 %v819
        %v840 = vpack.c.b16 %v832, %v832
        %v841 = vpack.c.b16 %v833, %v833
        %v842 = vpack.c.b16 %v834, %v834
        %v843 = vpack.c.b16 %v835, %v835
        %v844 = vpack.c.b16 %v836, %v836
        %v845 = vpack.c.b16 %v837, %v837
        %v846 = vpack.c.b16 %v838, %v838
        %v847 = vpack.c.b16 %v839, %v839
        %v860 = vunpack.c.l.b16 %v820
        %v861 = vunpack.c.h.b16 %v820
        %v862 = vunpack.c.l.b16 %v821
        %v863 = vunpack.c.h.b16 %v821
        %v864 = vunpack.c.l.b16 %v822
        %v865 = vunpack.c.h.b16 %v822
        %v866 = vunpack.c.l.b16 %v823
        %v867 = vunpack.c.h.b16 %v823
        %v868 = vpack.c.b16 %v860, %v860
        %v869 = vpack.c.b16 %v861, %v861
        %v870 = vpack.c.b16 %v862, %v862
        %v871 = vpack.c.b16 %v863, %v863
        %v872 = vpack.c.b16 %v864, %v864
        %v873 = vpack.c.b16 %v865, %v865
        %v874 = vpack.c.b16 %v866, %v866
        %v875 = vpack.c.b16 %v867, %v867
        %v880 = vunpack.c.l.b16 %v824
        %v881 = vunpack.c.h.b16 %v824
        %v882 = vunpack.c.l.b16 %v825
        %v883 = vunpack.c.h.b16 %v825
        %v884 = vunpack.c.l.b16 %v826
        %v885 = vunpack.c.h.b16 %v826
        %v886 = vunpack.c.l.b16 %v827
        %v887 = vunpack.c.h.b16 %v827
        %v888 = vpack.c.b16 %v880, %v880
        %v889 = vpack.c.b16 %v881, %v881
        %v890 = vpack.c.b16 %v882, %v882
        %v891 = vpack.c.b16 %v883, %v883
        %v892 = vpack.c.b16 %v884, %v884
        %v893 = vpack.c.b16 %v885, %v885
        %v894 = vpack.c.b16 %v886, %v886
        %v895 = vpack.c.b16 %v887, %v887
        %896 = vxpose.xlu0.c.b16.start [1/8] %v840, 128
        %897 = vxpose.xlu0.c.b16.cont [2/8] 0, 128
        %898 = vxpose.xlu0.c.b16.cont [3/8] 0, 128
        %899 = vxpose.xlu0.c.b16.cont [4/8] 0, 128
        %900 = vxpose.xlu0.c.b16.cont [5/8] 0, 128
        %901 = vxpose.xlu0.c.b16.cont [6/8] 0, 128
        %902 = vxpose.xlu0.c.b16.cont [7/8] 0, 128
        %903 = vxpose.xlu0.c.b16.end [8/8] 0, 128
        %v904 = vpop.trf.xlu0
        %v905 = vpop.trf.xlu0
        %v906 = vpop.trf.xlu0
        %v907 = vpop.trf.xlu0
        %v908 = vpop.trf.xlu0
        %v909 = vpop.trf.xlu0
        %v910 = vpop.trf.xlu0
        %v911 = vpop.trf.xlu0
        %vm912 = vcmask 64512
        %v914 = vsel %vm912, %v904, 0
        %vm916 = vcmask 1043456
        %v918 = vsel %vm916, %v868, 0
        %920 = vmatprep.subr.bf16.mxu0 0
        %921 = vmatpush1.bf16.msra.mxu0 0
        %922 = vmatprep.subr.bf16.mxu0 0
        %923 = vmatpush1.bf16.msra.mxu0 0
        %924 = vmatprep.subr.bf16.mxu0 0
        %925 = vmatpush1.bf16.msra.mxu0 0
        %926 = vmatprep.subr.bf16.mxu0 0
        %927 = vmatpush1.bf16.msra.mxu0 0
        %928 = vmatprep.subr.bf16.mxu0 0
        %929 = vmatpush1.bf16.msra.mxu0 0
        %930 = vmatprep.subr.bf16.mxu0 0
        %931 = vmatpush1.bf16.msra.mxu0 0
        %932 = vmatprep.subr.bf16.mxu0 0
        %933 = vmatpush1.bf16.msra.mxu0 0
        %934 = vmatprep.subr.bf16.mxu0 0
        %935 = vmatpush1.bf16.msra.mxu0 %v918
        %936 = vmatprep.subr.bf16.mxu0 0
        %937 = vmatpush2.bf16.msra.mxu0 0
        %938 = vmatprep.subr.bf16.mxu0 0
        %939 = vmatpush2.bf16.msra.mxu0 0
        %940 = vmatprep.subr.bf16.mxu0 0
        %941 = vmatpush2.bf16.msra.mxu0 0
        %942 = vmatprep.subr.bf16.mxu0 0
        %943 = vmatpush2.bf16.msra.mxu0 0
        %944 = vmatprep.subr.bf16.mxu0 0
        %945 = vmatpush2.bf16.msra.mxu0 0
        %946 = vmatprep.subr.bf16.mxu0 0
        %947 = vmatpush2.bf16.msra.mxu0 0
        %948 = vmatprep.subr.bf16.mxu0 0
        %949 = vmatpush2.bf16.msra.mxu0 0
        %950 = vmatprep.subr.bf16.mxu0 0
        %951 = vmatpush2.bf16.msra.mxu0 0
        %952 = vmatprep.mubr.bf16.mxu0 0
        %953 = vmatmul.mubr.bf16.gmra.mxu0 %v914
        %v954 = vpop.f32.mrf.mxu0
        %v955 = vadd.f32 0.0, %v954
        %v956 = vpop.f32.mrf.mxu0
        %v957 = vpop.f32.mrf.mxu0
        %v958 = vadd.f32 0.0, %v957
        %v959 = vpop.f32.mrf.mxu0
        %960 = vdwg.mxu0
        %961 = vxpose.xlu0.c.b16.start [1/8] %v841, 128
        %962 = vxpose.xlu0.c.b16.cont [2/8] 0, 128
        %963 = vxpose.xlu0.c.b16.cont [3/8] 0, 128
        %964 = vxpose.xlu0.c.b16.cont [4/8] 0, 128
        %965 = vxpose.xlu0.c.b16.cont [5/8] 0, 128
        %966 = vxpose.xlu0.c.b16.cont [6/8] 0, 128
        %967 = vxpose.xlu0.c.b16.cont [7/8] 0, 128
        %968 = vxpose.xlu0.c.b16.end [8/8] 0, 128
        %v969 = vpop.trf.xlu0
        %v970 = vpop.trf.xlu0
        %v971 = vpop.trf.xlu0
        %v972 = vpop.trf.xlu0
        %v973 = vpop.trf.xlu0
        %v974 = vpop.trf.xlu0
        %v975 = vpop.trf.xlu0
        %v976 = vpop.trf.xlu0
        %v978 = vsel %vm912, %v969, 0
        %v981 = vsel %vm916, %v869, 0
        %983 = vmatprep.subr.bf16.mxu0 0
        %984 = vmatpush1.bf16.msra.mxu0 0
        %985 = vmatprep.subr.bf16.mxu0 0
        %986 = vmatpush1.bf16.msra.mxu0 0
        %987 = vmatprep.subr.bf16.mxu0 0
        %988 = vmatpush1.bf16.msra.mxu0 0
        %989 = vmatprep.subr.bf16.mxu0 0
        %990 = vmatpush1.bf16.msra.mxu0 0
        %991 = vmatprep.subr.bf16.mxu0 0
        %992 = vmatpush1.bf16.msra.mxu0 0
        %993 = vmatprep.subr.bf16.mxu0 0
        %994 = vmatpush1.bf16.msra.mxu0 0
        %995 = vmatprep.subr.bf16.mxu0 0
        %996 = vmatpush1.bf16.msra.mxu0 0
        %997 = vmatprep.subr.bf16.mxu0 0
        %998 = vmatpush1.bf16.msra.mxu0 %v981
        %999 = vmatprep.subr.bf16.mxu0 0
        %1000 = vmatpush2.bf16.msra.mxu0 0
        %1001 = vmatprep.subr.bf16.mxu0 0
        %1002 = vmatpush2.bf16.msra.mxu0 0
        %1003 = vmatprep.subr.bf16.mxu0 0
        %1004 = vmatpush2.bf16.msra.mxu0 0
        %1005 = vmatprep.subr.bf16.mxu0 0
        %1006 = vmatpush2.bf16.msra.mxu0 0
        %1007 = vmatprep.subr.bf16.mxu0 0
        %1008 = vmatpush2.bf16.msra.mxu0 0
        %1009 = vmatprep.subr.bf16.mxu0 0
        %1010 = vmatpush2.bf16.msra.mxu0 0
        %1011 = vmatprep.subr.bf16.mxu0 0
        %1012 = vmatpush2.bf16.msra.mxu0 0
        %1013 = vmatprep.subr.bf16.mxu0 0
        %1014 = vmatpush2.bf16.msra.mxu0 0
        %1015 = vmatprep.mubr.bf16.mxu0 0
        %1016 = vmatmul.mubr.bf16.gmra.mxu0 %v978
        %v1017 = vpop.f32.mrf.mxu0
        %v1018 = vadd.f32 0.0, %v1017
        %v1019 = vpop.f32.mrf.mxu0
        %v1020 = vpop.f32.mrf.mxu0
        %v1021 = vadd.f32 0.0, %v1020
        %v1022 = vpop.f32.mrf.mxu0
        %1023 = vdwg.mxu0
        %1024 = vxpose.xlu0.c.b16.start [1/8] %v842, 128
        %1025 = vxpose.xlu0.c.b16.cont [2/8] 0, 128
        %1026 = vxpose.xlu0.c.b16.cont [3/8] 0, 128
        %1027 = vxpose.xlu0.c.b16.cont [4/8] 0, 128
        %1028 = vxpose.xlu0.c.b16.cont [5/8] 0, 128
        %1029 = vxpose.xlu0.c.b16.cont [6/8] 0, 128
        %1030 = vxpose.xlu0.c.b16.cont [7/8] 0, 128
        %1031 = vxpose.xlu0.c.b16.end [8/8] 0, 128
        %v1032 = vpop.trf.xlu0
        %v1033 = vpop.trf.xlu0
        %v1034 = vpop.trf.xlu0
        %v1035 = vpop.trf.xlu0
        %v1036 = vpop.trf.xlu0
        %v1037 = vpop.trf.xlu0
        %v1038 = vpop.trf.xlu0
        %v1039 = vpop.trf.xlu0
        %v1041 = vsel %vm912, %v1032, 0
        %v1044 = vsel %vm916, %v870, 0
        %1046 = vmatprep.subr.bf16.mxu0 0
        %1047 = vmatpush1.bf16.msra.mxu0 0
        %1048 = vmatprep.subr.bf16.mxu0 0
        %1049 = vmatpush1.bf16.msra.mxu0 0
        %1050 = vmatprep.subr.bf16.mxu0 0
        %1051 = vmatpush1.bf16.msra.mxu0 0
        %1052 = vmatprep.subr.bf16.mxu0 0
        %1053 = vmatpush1.bf16.msra.mxu0 0
        %1054 = vmatprep.subr.bf16.mxu0 0
        %1055 = vmatpush1.bf16.msra.mxu0 0
        %1056 = vmatprep.subr.bf16.mxu0 0
        %1057 = vmatpush1.bf16.msra.mxu0 0
        %1058 = vmatprep.subr.bf16.mxu0 0
        %1059 = vmatpush1.bf16.msra.mxu0 0
        %1060 = vmatprep.subr.bf16.mxu0 0
        %1061 = vmatpush1.bf16.msra.mxu0 %v1044
        %1062 = vmatprep.subr.bf16.mxu0 0
        %1063 = vmatpush2.bf16.msra.mxu0 0
        %1064 = vmatprep.subr.bf16.mxu0 0
        %1065 = vmatpush2.bf16.msra.mxu0 0
        %1066 = vmatprep.subr.bf16.mxu0 0
        %1067 = vmatpush2.bf16.msra.mxu0 0
        %1068 = vmatprep.subr.bf16.mxu0 0
        %1069 = vmatpush2.bf16.msra.mxu0 0
        %1070 = vmatprep.subr.bf16.mxu0 0
        %1071 = vmatpush2.bf16.msra.mxu0 0
        %1072 = vmatprep.subr.bf16.mxu0 0
        %1073 = vmatpush2.bf16.msra.mxu0 0
        %1074 = vmatprep.subr.bf16.mxu0 0
        %1075 = vmatpush2.bf16.msra.mxu0 0
        %1076 = vmatprep.subr.bf16.mxu0 0
        %1077 = vmatpush2.bf16.msra.mxu0 0
        %1078 = vmatprep.mubr.bf16.mxu0 0
        %1079 = vmatmul.mubr.bf16.gmra.mxu0 %v1041
        %v1080 = vpop.f32.mrf.mxu0
        %v1081 = vadd.f32 0.0, %v1080
        %v1082 = vpop.f32.mrf.mxu0
        %v1083 = vpop.f32.mrf.mxu0
        %v1084 = vadd.f32 0.0, %v1083
        %v1085 = vpop.f32.mrf.mxu0
        %1086 = vdwg.mxu0
        %1087 = vxpose.xlu0.c.b16.start [1/8] %v843, 128
        %1088 = vxpose.xlu0.c.b16.cont [2/8] 0, 128
        %1089 = vxpose.xlu0.c.b16.cont [3/8] 0, 128
        %1090 = vxpose.xlu0.c.b16.cont [4/8] 0, 128
        %1091 = vxpose.xlu0.c.b16.cont [5/8] 0, 128
        %1092 = vxpose.xlu0.c.b16.cont [6/8] 0, 128
        %1093 = vxpose.xlu0.c.b16.cont [7/8] 0, 128
        %1094 = vxpose.xlu0.c.b16.end [8/8] 0, 128
        %v1095 = vpop.trf.xlu0
        %v1096 = vpop.trf.xlu0
        %v1097 = vpop.trf.xlu0
        %v1098 = vpop.trf.xlu0
        %v1099 = vpop.trf.xlu0
        %v1100 = vpop.trf.xlu0
        %v1101 = vpop.trf.xlu0
        %v1102 = vpop.trf.xlu0
        %v1104 = vsel %vm912, %v1095, 0
        %v1107 = vsel %vm916, %v871, 0
        %1109 = vmatprep.subr.bf16.mxu0 0
        %1110 = vmatpush1.bf16.msra.mxu0 0
        %1111 = vmatprep.subr.bf16.mxu0 0
        %1112 = vmatpush1.bf16.msra.mxu0 0
        %1113 = vmatprep.subr.bf16.mxu0 0
        %1114 = vmatpush1.bf16.msra.mxu0 0
        %1115 = vmatprep.subr.bf16.mxu0 0
        %1116 = vmatpush1.bf16.msra.mxu0 0
        %1117 = vmatprep.subr.bf16.mxu0 0
        %1118 = vmatpush1.bf16.msra.mxu0 0
        %1119 = vmatprep.subr.bf16.mxu0 0
        %1120 = vmatpush1.bf16.msra.mxu0 0
        %1121 = vmatprep.subr.bf16.mxu0 0
        %1122 = vmatpush1.bf16.msra.mxu0 0
        %1123 = vmatprep.subr.bf16.mxu0 0
        %1124 = vmatpush1.bf16.msra.mxu0 %v1107
        %1125 = vmatprep.subr.bf16.mxu0 0
        %1126 = vmatpush2.bf16.msra.mxu0 0
        %1127 = vmatprep.subr.bf16.mxu0 0
        %1128 = vmatpush2.bf16.msra.mxu0 0
        %1129 = vmatprep.subr.bf16.mxu0 0
        %1130 = vmatpush2.bf16.msra.mxu0 0
        %1131 = vmatprep.subr.bf16.mxu0 0
        %1132 = vmatpush2.bf16.msra.mxu0 0
        %1133 = vmatprep.subr.bf16.mxu0 0
        %1134 = vmatpush2.bf16.msra.mxu0 0
        %1135 = vmatprep.subr.bf16.mxu0 0
        %1136 = vmatpush2.bf16.msra.mxu0 0
        %1137 = vmatprep.subr.bf16.mxu0 0
        %1138 = vmatpush2.bf16.msra.mxu0 0
        %1139 = vmatprep.subr.bf16.mxu0 0
        %1140 = vmatpush2.bf16.msra.mxu0 0
        %1141 = vmatprep.mubr.bf16.mxu0 0
        %1142 = vmatmul.mubr.bf16.gmra.mxu0 %v1104
        %v1143 = vpop.f32.mrf.mxu0
        %v1144 = vadd.f32 0.0, %v1143
        %v1145 = vpop.f32.mrf.mxu0
        %v1146 = vpop.f32.mrf.mxu0
        %v1147 = vadd.f32 0.0, %v1146
        %v1148 = vpop.f32.mrf.mxu0
        %1149 = vdwg.mxu0
        %1150 = vxpose.xlu0.c.b16.start [1/8] %v844, 128
        %1151 = vxpose.xlu0.c.b16.cont [2/8] 0, 128
        %1152 = vxpose.xlu0.c.b16.cont [3/8] 0, 128
        %1153 = vxpose.xlu0.c.b16.cont [4/8] 0, 128
        %1154 = vxpose.xlu0.c.b16.cont [5/8] 0, 128
        %1155 = vxpose.xlu0.c.b16.cont [6/8] 0, 128
        %1156 = vxpose.xlu0.c.b16.cont [7/8] 0, 128
        %1157 = vxpose.xlu0.c.b16.end [8/8] 0, 128
        %v1158 = vpop.trf.xlu0
        %v1159 = vpop.trf.xlu0
        %v1160 = vpop.trf.xlu0
        %v1161 = vpop.trf.xlu0
        %v1162 = vpop.trf.xlu0
        %v1163 = vpop.trf.xlu0
        %v1164 = vpop.trf.xlu0
        %v1165 = vpop.trf.xlu0
        %v1167 = vsel %vm912, %v1158, 0
        %v1170 = vsel %vm916, %v872, 0
        %1172 = vmatprep.subr.bf16.mxu0 0
        %1173 = vmatpush1.bf16.msra.mxu0 0
        %1174 = vmatprep.subr.bf16.mxu0 0
        %1175 = vmatpush1.bf16.msra.mxu0 0
        %1176 = vmatprep.subr.bf16.mxu0 0
        %1177 = vmatpush1.bf16.msra.mxu0 0
        %1178 = vmatprep.subr.bf16.mxu0 0
        %1179 = vmatpush1.bf16.msra.mxu0 0
        %1180 = vmatprep.subr.bf16.mxu0 0
        %1181 = vmatpush1.bf16.msra.mxu0 0
        %1182 = vmatprep.subr.bf16.mxu0 0
        %1183 = vmatpush1.bf16.msra.mxu0 0
        %1184 = vmatprep.subr.bf16.mxu0 0
        %1185 = vmatpush1.bf16.msra.mxu0 0
        %1186 = vmatprep.subr.bf16.mxu0 0
        %1187 = vmatpush1.bf16.msra.mxu0 %v1170
        %1188 = vmatprep.subr.bf16.mxu0 0
        %1189 = vmatpush2.bf16.msra.mxu0 0
        %1190 = vmatprep.subr.bf16.mxu0 0
        %1191 = vmatpush2.bf16.msra.mxu0 0
        %1192 = vmatprep.subr.bf16.mxu0 0
        %1193 = vmatpush2.bf16.msra.mxu0 0
        %1194 = vmatprep.subr.bf16.mxu0 0
        %1195 = vmatpush2.bf16.msra.mxu0 0
        %1196 = vmatprep.subr.bf16.mxu0 0
        %1197 = vmatpush2.bf16.msra.mxu0 0
        %1198 = vmatprep.subr.bf16.mxu0 0
        %1199 = vmatpush2.bf16.msra.mxu0 0
        %1200 = vmatprep.subr.bf16.mxu0 0
        %1201 = vmatpush2.bf16.msra.mxu0 0
        %1202 = vmatprep.subr.bf16.mxu0 0
        %1203 = vmatpush2.bf16.msra.mxu0 0
        %1204 = vmatprep.mubr.bf16.mxu0 0
        %1205 = vmatmul.mubr.bf16.gmra.mxu0 %v1167
        %v1206 = vpop.f32.mrf.mxu0
        %v1207 = vadd.f32 0.0, %v1206
        %v1208 = vpop.f32.mrf.mxu0
        %v1209 = vpop.f32.mrf.mxu0
        %v1210 = vadd.f32 0.0, %v1209
        %v1211 = vpop.f32.mrf.mxu0
        %1212 = vdwg.mxu0
        %1213 = vxpose.xlu0.c.b16.start [1/8] %v845, 128
        %1214 = vxpose.xlu0.c.b16.cont [2/8] 0, 128
        %1215 = vxpose.xlu0.c.b16.cont [3/8] 0, 128
        %1216 = vxpose.xlu0.c.b16.cont [4/8] 0, 128
        %1217 = vxpose.xlu0.c.b16.cont [5/8] 0, 128
        %1218 = vxpose.xlu0.c.b16.cont [6/8] 0, 128
        %1219 = vxpose.xlu0.c.b16.cont [7/8] 0, 128
        %1220 = vxpose.xlu0.c.b16.end [8/8] 0, 128
        %v1221 = vpop.trf.xlu0
        %v1222 = vpop.trf.xlu0
        %v1223 = vpop.trf.xlu0
        %v1224 = vpop.trf.xlu0
        %v1225 = vpop.trf.xlu0
        %v1226 = vpop.trf.xlu0
        %v1227 = vpop.trf.xlu0
        %v1228 = vpop.trf.xlu0
        %v1230 = vsel %vm912, %v1221, 0
        %v1233 = vsel %vm916, %v873, 0
        %1235 = vmatprep.subr.bf16.mxu0 0
        %1236 = vmatpush1.bf16.msra.mxu0 0
        %1237 = vmatprep.subr.bf16.mxu0 0
        %1238 = vmatpush1.bf16.msra.mxu0 0
        %1239 = vmatprep.subr.bf16.mxu0 0
        %1240 = vmatpush1.bf16.msra.mxu0 0
        %1241 = vmatprep.subr.bf16.mxu0 0
        %1242 = vmatpush1.bf16.msra.mxu0 0
        %1243 = vmatprep.subr.bf16.mxu0 0
        %1244 = vmatpush1.bf16.msra.mxu0 0
        %1245 = vmatprep.subr.bf16.mxu0 0
        %1246 = vmatpush1.bf16.msra.mxu0 0
        %1247 = vmatprep.subr.bf16.mxu0 0
        %1248 = vmatpush1.bf16.msra.mxu0 0
        %1249 = vmatprep.subr.bf16.mxu0 0
        %1250 = vmatpush1.bf16.msra.mxu0 %v1233
        %1251 = vmatprep.subr.bf16.mxu0 0
        %1252 = vmatpush2.bf16.msra.mxu0 0
        %1253 = vmatprep.subr.bf16.mxu0 0
        %1254 = vmatpush2.bf16.msra.mxu0 0
        %1255 = vmatprep.subr.bf16.mxu0 0
        %1256 = vmatpush2.bf16.msra.mxu0 0
        %1257 = vmatprep.subr.bf16.mxu0 0
        %1258 = vmatpush2.bf16.msra.mxu0 0
        %1259 = vmatprep.subr.bf16.mxu0 0
        %1260 = vmatpush2.bf16.msra.mxu0 0
        %1261 = vmatprep.subr.bf16.mxu0 0
        %1262 = vmatpush2.bf16.msra.mxu0 0
        %1263 = vmatprep.subr.bf16.mxu0 0
        %1264 = vmatpush2.bf16.msra.mxu0 0
        %1265 = vmatprep.subr.bf16.mxu0 0
        %1266 = vmatpush2.bf16.msra.mxu0 0
        %1267 = vmatprep.mubr.bf16.mxu0 0
        %1268 = vmatmul.mubr.bf16.gmra.mxu0 %v1230
        %v1269 = vpop.f32.mrf.mxu0
        %v1270 = vadd.f32 0.0, %v1269
        %v1271 = vpop.f32.mrf.mxu0
        %v1272 = vpop.f32.mrf.mxu0
        %v1273 = vadd.f32 0.0, %v1272
        %v1274 = vpop.f32.mrf.mxu0
        %1275 = vdwg.mxu0
        %1276 = vxpose.xlu0.c.b16.start [1/8] %v846, 128
        %1277 = vxpose.xlu0.c.b16.cont [2/8] 0, 128
        %1278 = vxpose.xlu0.c.b16.cont [3/8] 0, 128
        %1279 = vxpose.xlu0.c.b16.cont [4/8] 0, 128
        %1280 = vxpose.xlu0.c.b16.cont [5/8] 0, 128
        %1281 = vxpose.xlu0.c.b16.cont [6/8] 0, 128
        %1282 = vxpose.xlu0.c.b16.cont [7/8] 0, 128
        %1283 = vxpose.xlu0.c.b16.end [8/8] 0, 128
        %v1284 = vpop.trf.xlu0
        %v1285 = vpop.trf.xlu0
        %v1286 = vpop.trf.xlu0
        %v1287 = vpop.trf.xlu0
        %v1288 = vpop.trf.xlu0
        %v1289 = vpop.trf.xlu0
        %v1290 = vpop.trf.xlu0
        %v1291 = vpop.trf.xlu0
        %v1293 = vsel %vm912, %v1284, 0
        %v1296 = vsel %vm916, %v874, 0
        %1298 = vmatprep.subr.bf16.mxu0 0
        %1299 = vmatpush1.bf16.msra.mxu0 0
        %1300 = vmatprep.subr.bf16.mxu0 0
        %1301 = vmatpush1.bf16.msra.mxu0 0
        %1302 = vmatprep.subr.bf16.mxu0 0
        %1303 = vmatpush1.bf16.msra.mxu0 0
        %1304 = vmatprep.subr.bf16.mxu0 0
        %1305 = vmatpush1.bf16.msra.mxu0 0
        %1306 = vmatprep.subr.bf16.mxu0 0
        %1307 = vmatpush1.bf16.msra.mxu0 0
        %1308 = vmatprep.subr.bf16.mxu0 0
        %1309 = vmatpush1.bf16.msra.mxu0 0
        %1310 = vmatprep.subr.bf16.mxu0 0
        %1311 = vmatpush1.bf16.msra.mxu0 0
        %1312 = vmatprep.subr.bf16.mxu0 0
        %1313 = vmatpush1.bf16.msra.mxu0 %v1296
        %1314 = vmatprep.subr.bf16.mxu0 0
        %1315 = vmatpush2.bf16.msra.mxu0 0
        %1316 = vmatprep.subr.bf16.mxu0 0
        %1317 = vmatpush2.bf16.msra.mxu0 0
        %1318 = vmatprep.subr.bf16.mxu0 0
        %1319 = vmatpush2.bf16.msra.mxu0 0
        %1320 = vmatprep.subr.bf16.mxu0 0
        %1321 = vmatpush2.bf16.msra.mxu0 0
        %1322 = vmatprep.subr.bf16.mxu0 0
        %1323 = vmatpush2.bf16.msra.mxu0 0
        %1324 = vmatprep.subr.bf16.mxu0 0
        %1325 = vmatpush2.bf16.msra.mxu0 0
        %1326 = vmatprep.subr.bf16.mxu0 0
        %1327 = vmatpush2.bf16.msra.mxu0 0
        %1328 = vmatprep.subr.bf16.mxu0 0
        %1329 = vmatpush2.bf16.msra.mxu0 0
        %1330 = vmatprep.mubr.bf16.mxu0 0
        %1331 = vmatmul.mubr.bf16.gmra.mxu0 %v1293
        %v1332 = vpop.f32.mrf.mxu0
        %v1333 = vadd.f32 0.0, %v1332
        %v1334 = vpop.f32.mrf.mxu0
        %v1335 = vpop.f32.mrf.mxu0
        %v1336 = vadd.f32 0.0, %v1335
        %v1337 = vpop.f32.mrf.mxu0
        %1338 = vdwg.mxu0
        %1339 = vxpose.xlu0.c.b16.start [1/8] %v847, 128
        %1340 = vxpose.xlu0.c.b16.cont [2/8] 0, 128
        %1341 = vxpose.xlu0.c.b16.cont [3/8] 0, 128
        %1342 = vxpose.xlu0.c.b16.cont [4/8] 0, 128
        %1343 = vxpose.xlu0.c.b16.cont [5/8] 0, 128
        %1344 = vxpose.xlu0.c.b16.cont [6/8] 0, 128
        %1345 = vxpose.xlu0.c.b16.cont [7/8] 0, 128
        %1346 = vxpose.xlu0.c.b16.end [8/8] 0, 128
        %v1347 = vpop.trf.xlu0
        %v1348 = vpop.trf.xlu0
        %v1349 = vpop.trf.xlu0
        %v1350 = vpop.trf.xlu0
        %v1351 = vpop.trf.xlu0
        %v1352 = vpop.trf.xlu0
        %v1353 = vpop.trf.xlu0
        %v1354 = vpop.trf.xlu0
        %v1356 = vsel %vm912, %v1347, 0
        %v1359 = vsel %vm916, %v875, 0
        %1361 = vmatprep.subr.bf16.mxu0 0
        %1362 = vmatpush1.bf16.msra.mxu0 0
        %1363 = vmatprep.subr.bf16.mxu0 0
        %1364 = vmatpush1.bf16.msra.mxu0 0
        %1365 = vmatprep.subr.bf16.mxu0 0
        %1366 = vmatpush1.bf16.msra.mxu0 0
        %1367 = vmatprep.subr.bf16.mxu0 0
        %1368 = vmatpush1.bf16.msra.mxu0 0
        %1369 = vmatprep.subr.bf16.mxu0 0
        %1370 = vmatpush1.bf16.msra.mxu0 0
        %1371 = vmatprep.subr.bf16.mxu0 0
        %1372 = vmatpush1.bf16.msra.mxu0 0
        %1373 = vmatprep.subr.bf16.mxu0 0
        %1374 = vmatpush1.bf16.msra.mxu0 0
        %1375 = vmatprep.subr.bf16.mxu0 0
        %1376 = vmatpush1.bf16.msra.mxu0 %v1359
        %1377 = vmatprep.subr.bf16.mxu0 0
        %1378 = vmatpush2.bf16.msra.mxu0 0
        %1379 = vmatprep.subr.bf16.mxu0 0
        %1380 = vmatpush2.bf16.msra.mxu0 0
        %1381 = vmatprep.subr.bf16.mxu0 0
        %1382 = vmatpush2.bf16.msra.mxu0 0
        %1383 = vmatprep.subr.bf16.mxu0 0
        %1384 = vmatpush2.bf16.msra.mxu0 0
        %1385 = vmatprep.subr.bf16.mxu0 0
        %1386 = vmatpush2.bf16.msra.mxu0 0
        %1387 = vmatprep.subr.bf16.mxu0 0
        %1388 = vmatpush2.bf16.msra.mxu0 0
        %1389 = vmatprep.subr.bf16.mxu0 0
        %1390 = vmatpush2.bf16.msra.mxu0 0
        %1391 = vmatprep.subr.bf16.mxu0 0
        %1392 = vmatpush2.bf16.msra.mxu0 0
        %1393 = vmatprep.mubr.bf16.mxu0 0
        %1394 = vmatmul.mubr.bf16.gmra.mxu0 %v1356
        %v1395 = vpop.f32.mrf.mxu0
        %v1396 = vadd.f32 0.0, %v1395
        %v1397 = vpop.f32.mrf.mxu0
        %v1398 = vpop.f32.mrf.mxu0
        %v1399 = vadd.f32 0.0, %v1398
        %v1400 = vpop.f32.mrf.mxu0
        %1401 = vdwg.mxu0
        %vm1402 = vcmask 130048
        %v1403 = vsel %vm1402, %v955, -inf
        %1404 = vmax.xlane.f32.xlu0 %v1403
        %v1405 = vpop.xlane.xlu0 %1404
        %v1406 = vsel %vm1402, %v958, -inf
        %1407 = vmax.xlane.f32.xlu0 %v1406
        %v1408 = vpop.xlane.xlu0 %1407
        %v1409 = vsel %vm1402, %v1018, -inf
        %1410 = vmax.xlane.f32.xlu0 %v1409
        %v1411 = vpop.xlane.xlu0 %1410
        %v1412 = vsel %vm1402, %v1021, -inf
        %1413 = vmax.xlane.f32.xlu0 %v1412
        %v1414 = vpop.xlane.xlu0 %1413
        %v1415 = vsel %vm1402, %v1081, -inf
        %1416 = vmax.xlane.f32.xlu0 %v1415
        %v1417 = vpop.xlane.xlu0 %1416
        %v1418 = vsel %vm1402, %v1084, -inf
        %1419 = vmax.xlane.f32.xlu0 %v1418
        %v1420 = vpop.xlane.xlu0 %1419
        %v1421 = vsel %vm1402, %v1144, -inf
        %1422 = vmax.xlane.f32.xlu0 %v1421
        %v1423 = vpop.xlane.xlu0 %1422
        %v1424 = vsel %vm1402, %v1147, -inf
        %1425 = vmax.xlane.f32.xlu0 %v1424
        %v1426 = vpop.xlane.xlu0 %1425
        %v1427 = vsel %vm1402, %v1207, -inf
        %1428 = vmax.xlane.f32.xlu0 %v1427
        %v1429 = vpop.xlane.xlu0 %1428
        %v1430 = vsel %vm1402, %v1210, -inf
        %1431 = vmax.xlane.f32.xlu0 %v1430
        %v1432 = vpop.xlane.xlu0 %1431
        %v1433 = vsel %vm1402, %v1270, -inf
        %1434 = vmax.xlane.f32.xlu0 %v1433
        %v1435 = vpop.xlane.xlu0 %1434
        %v1436 = vsel %vm1402, %v1273, -inf
        %1437 = vmax.xlane.f32.xlu0 %v1436
        %v1438 = vpop.xlane.xlu0 %1437
        %v1439 = vsel %vm1402, %v1333, -inf
        %1440 = vmax.xlane.f32.xlu0 %v1439
        %v1441 = vpop.xlane.xlu0 %1440
        %v1442 = vsel %vm1402, %v1336, -inf
        %1443 = vmax.xlane.f32.xlu0 %v1442
        %v1444 = vpop.xlane.xlu0 %1443
        %v1445 = vsel %vm1402, %v1396, -inf
        %1446 = vmax.xlane.f32.xlu0 %v1445
        %v1447 = vpop.xlane.xlu0 %1446
        %v1448 = vsel %vm1402, %v1399, -inf
        %1449 = vmax.xlane.f32.xlu0 %v1448
        %v1450 = vpop.xlane.xlu0 %1449
        %v1451 = vsub.f32 %v955, %v1405
        %v1452 = vsub.f32 %v958, %v1408
        %v1453 = vsub.f32 %v1018, %v1411
        %v1454 = vsub.f32 %v1021, %v1414
        %v1455 = vsub.f32 %v1081, %v1417
        %v1456 = vsub.f32 %v1084, %v1420
        %v1457 = vsub.f32 %v1144, %v1423
        %v1458 = vsub.f32 %v1147, %v1426
        %v1459 = vsub.f32 %v1207, %v1429
        %v1460 = vsub.f32 %v1210, %v1432
        %v1461 = vsub.f32 %v1270, %v1435
        %v1462 = vsub.f32 %v1273, %v1438
        %v1463 = vsub.f32 %v1333, %v1441
        %v1464 = vsub.f32 %v1336, %v1444
        %v1465 = vsub.f32 %v1396, %v1447
        %v1466 = vsub.f32 %v1399, %v1450
        %v1467 = vmul.f32 %v1451, 1.442695
        %v1468 = vpow.pop %v1467
        %v1469 = vmul.f32 %v1452, 1.442695
        %v1470 = vpow.pop %v1469
        %v1471 = vmul.f32 %v1453, 1.442695
        %v1472 = vpow.pop %v1471
        %v1473 = vmul.f32 %v1454, 1.442695
        %v1474 = vpow.pop %v1473
        %v1475 = vmul.f32 %v1455, 1.442695
        %v1476 = vpow.pop %v1475
        %v1477 = vmul.f32 %v1456, 1.442695
        %v1478 = vpow.pop %v1477
        %v1479 = vmul.f32 %v1457, 1.442695
        %v1480 = vpow.pop %v1479
        %v1481 = vmul.f32 %v1458, 1.442695
        %v1482 = vpow.pop %v1481
        %v1483 = vmul.f32 %v1459, 1.442695
        %v1484 = vpow.pop %v1483
        %v1485 = vmul.f32 %v1460, 1.442695
        %v1486 = vpow.pop %v1485
        %v1487 = vmul.f32 %v1461, 1.442695
        %v1488 = vpow.pop %v1487
        %v1489 = vmul.f32 %v1462, 1.442695
        %v1490 = vpow.pop %v1489
        %v1491 = vmul.f32 %v1463, 1.442695
        %v1492 = vpow.pop %v1491
        %v1493 = vmul.f32 %v1464, 1.442695
        %v1494 = vpow.pop %v1493
        %v1495 = vmul.f32 %v1465, 1.442695
        %v1496 = vpow.pop %v1495
        %v1497 = vmul.f32 %v1466, 1.442695
        %v1498 = vpow.pop %v1497
        %v1499 = vsel %vm1402, %v1468, 0.0
        %1500 = vadd.xlane.f32.xlu0 %v1499
        %v1501 = vpop.xlane.xlu0 %1500
        %v1502 = vsel %vm1402, %v1470, 0.0
        %1503 = vadd.xlane.f32.xlu0 %v1502
        %v1504 = vpop.xlane.xlu0 %1503
        %v1505 = vsel %vm1402, %v1472, 0.0
        %1506 = vadd.xlane.f32.xlu0 %v1505
        %v1507 = vpop.xlane.xlu0 %1506
        %v1508 = vsel %vm1402, %v1474, 0.0
        %1509 = vadd.xlane.f32.xlu0 %v1508
        %v1510 = vpop.xlane.xlu0 %1509
        %v1511 = vsel %vm1402, %v1476, 0.0
        %1512 = vadd.xlane.f32.xlu0 %v1511
        %v1513 = vpop.xlane.xlu0 %1512
        %v1514 = vsel %vm1402, %v1478, 0.0
        %1515 = vadd.xlane.f32.xlu0 %v1514
        %v1516 = vpop.xlane.xlu0 %1515
        %v1517 = vsel %vm1402, %v1480, 0.0
        %1518 = vadd.xlane.f32.xlu0 %v1517
        %v1519 = vpop.xlane.xlu0 %1518
        %v1520 = vsel %vm1402, %v1482, 0.0
        %1521 = vadd.xlane.f32.xlu0 %v1520
        %v1522 = vpop.xlane.xlu0 %1521
        %v1523 = vsel %vm1402, %v1484, 0.0
        %1524 = vadd.xlane.f32.xlu0 %v1523
        %v1525 = vpop.xlane.xlu0 %1524
        %v1526 = vsel %vm1402, %v1486, 0.0
        %1527 = vadd.xlane.f32.xlu0 %v1526
        %v1528 = vpop.xlane.xlu0 %1527
        %v1529 = vsel %vm1402, %v1488, 0.0
        %1530 = vadd.xlane.f32.xlu0 %v1529
        %v1531 = vpop.xlane.xlu0 %1530
        %v1532 = vsel %vm1402, %v1490, 0.0
        %1533 = vadd.xlane.f32.xlu0 %v1532
        %v1534 = vpop.xlane.xlu0 %1533
        %v1535 = vsel %vm1402, %v1492, 0.0
        %1536 = vadd.xlane.f32.xlu0 %v1535
        %v1537 = vpop.xlane.xlu0 %1536
        %v1538 = vsel %vm1402, %v1494, 0.0
        %1539 = vadd.xlane.f32.xlu0 %v1538
        %v1540 = vpop.xlane.xlu0 %1539
        %v1541 = vsel %vm1402, %v1496, 0.0
        %1542 = vadd.xlane.f32.xlu0 %v1541
        %v1543 = vpop.xlane.xlu0 %1542
        %v1544 = vsel %vm1402, %v1498, 0.0
        %1545 = vadd.xlane.f32.xlu0 %v1544
        %v1546 = vpop.xlane.xlu0 %1545
        %v1547 = vrcp.pop %v1501
        %v1548 = vmul.f32 %v1468, %v1547
        %v1549 = vrcp.pop %v1504
        %v1550 = vmul.f32 %v1470, %v1549
        %v1551 = vrcp.pop %v1507
        %v1552 = vmul.f32 %v1472, %v1551
        %v1553 = vrcp.pop %v1510
        %v1554 = vmul.f32 %v1474, %v1553
        %v1555 = vrcp.pop %v1513
        %v1556 = vmul.f32 %v1476, %v1555
        %v1557 = vrcp.pop %v1516
        %v1558 = vmul.f32 %v1478, %v1557
        %v1559 = vrcp.pop %v1519
        %v1560 = vmul.f32 %v1480, %v1559
        %v1561 = vrcp.pop %v1522
        %v1562 = vmul.f32 %v1482, %v1561
        %v1563 = vrcp.pop %v1525
        %v1564 = vmul.f32 %v1484, %v1563
        %v1565 = vrcp.pop %v1528
        %v1566 = vmul.f32 %v1486, %v1565
        %v1567 = vrcp.pop %v1531
        %v1568 = vmul.f32 %v1488, %v1567
        %v1569 = vrcp.pop %v1534
        %v1570 = vmul.f32 %v1490, %v1569
        %v1571 = vrcp.pop %v1537
        %v1572 = vmul.f32 %v1492, %v1571
        %v1573 = vrcp.pop %v1540
        %v1574 = vmul.f32 %v1494, %v1573
        %v1575 = vrcp.pop %v1543
        %v1576 = vmul.f32 %v1496, %v1575
        %v1577 = vrcp.pop %v1546
        %v1578 = vmul.f32 %v1498, %v1577
        %v1587 = vlaneseq
        %v1588 = vshrl.u32 %v1587, 7
        %v1589 = vsub.s32 0, %v1588
        %v1590 = vrot.slane %v580, %v1589
        %v1591 = vlaneseq
        %v1592 = vshrl.u32 %v1591, 7
        %v1593 = vsub.s32 0, %v1592
        %v1594 = vrot.slane %v581, %v1593
        %v1595 = vlaneseq
        %v1596 = vshrl.u32 %v1595, 7
        %v1597 = vsub.s32 0, %v1596
        %v1598 = vrot.slane %v582, %v1597
        %v1599 = vlaneseq
        %v1600 = vshrl.u32 %v1599, 7
        %v1601 = vsub.s32 0, %v1600
        %v1602 = vrot.slane %v583, %v1601
        %v1603 = vlaneseq
        %v1604 = vshrl.u32 %v1603, 7
        %v1605 = vsub.s32 0, %v1604
        %v1606 = vrot.slane %v584, %v1605
        %v1607 = vlaneseq
        %v1608 = vshrl.u32 %v1607, 7
        %v1609 = vsub.s32 0, %v1608
        %v1610 = vrot.slane %v585, %v1609
        %v1611 = vlaneseq
        %v1612 = vshrl.u32 %v1611, 7
        %v1613 = vsub.s32 0, %v1612
        %v1614 = vrot.slane %v586, %v1613
        %v1615 = vlaneseq
        %v1616 = vshrl.u32 %v1615, 7
        %v1617 = vsub.s32 0, %v1616
        %v1618 = vrot.slane %v587, %v1617
        %1619 = vset.pattern.permute.xlu0 0
        %1620 = vperm.xlu0 %1619, %v1590
        %v1621 = vpop.permute.xlu0 %1620
        %1623 = vset.pattern.permute.xlu0 0
        %1624 = vperm.xlu0 %1623, %v1594
        %v1625 = vpop.permute.xlu0 %1624
        %1627 = vset.pattern.permute.xlu0 0
        %1628 = vperm.xlu0 %1627, %v1598
        %v1629 = vpop.permute.xlu0 %1628
        %1631 = vset.pattern.permute.xlu0 0
        %1632 = vperm.xlu0 %1631, %v1602
        %v1633 = vpop.permute.xlu0 %1632
        %1635 = vset.pattern.permute.xlu0 0
        %1636 = vperm.xlu0 %1635, %v1606
        %v1637 = vpop.permute.xlu0 %1636
        %1639 = vset.pattern.permute.xlu0 0
        %1640 = vperm.xlu0 %1639, %v1610
        %v1641 = vpop.permute.xlu0 %1640
        %1643 = vset.pattern.permute.xlu0 0
        %1644 = vperm.xlu0 %1643, %v1614
        %v1645 = vpop.permute.xlu0 %1644
        %1647 = vset.pattern.permute.xlu0 0
        %1648 = vperm.xlu0 %1647, %v1618
        %v1649 = vpop.permute.xlu0 %1648
        %v1651 = vmul.f32 %v1621, %v1548
        %v1652 = vmul.f32 %v1621, %v1550
        %v1653 = vmul.f32 %v1625, %v1552
        %v1654 = vmul.f32 %v1625, %v1554
        %v1655 = vmul.f32 %v1629, %v1556
        %v1656 = vmul.f32 %v1629, %v1558
        %v1657 = vmul.f32 %v1633, %v1560
        %v1658 = vmul.f32 %v1633, %v1562
        %v1659 = vmul.f32 %v1637, %v1564
        %v1660 = vmul.f32 %v1637, %v1566
        %v1661 = vmul.f32 %v1641, %v1568
        %v1662 = vmul.f32 %v1641, %v1570
        %v1663 = vmul.f32 %v1645, %v1572
        %v1664 = vmul.f32 %v1645, %v1574
        %v1665 = vmul.f32 %v1649, %v1576
        %v1666 = vmul.f32 %v1649, %v1578
        %v1667 = vadd.f32 %v1651, %v564
        %v1668 = vadd.f32 %v1652, %v565
        %v1669 = vadd.f32 %v1653, %v566
        %v1670 = vadd.f32 %v1654, %v567
        %v1671 = vadd.f32 %v1655, %v568
        %v1672 = vadd.f32 %v1656, %v569
        %v1673 = vadd.f32 %v1657, %v570
        %v1674 = vadd.f32 %v1658, %v571
        %v1675 = vadd.f32 %v1659, %v572
        %v1676 = vadd.f32 %v1660, %v573
        %v1677 = vadd.f32 %v1661, %v574
        %v1678 = vadd.f32 %v1662, %v575
        %v1679 = vadd.f32 %v1663, %v576
        %v1680 = vadd.f32 %v1664, %v577
        %v1681 = vadd.f32 %v1665, %v578
        %v1682 = vadd.f32 %v1666, %v579
        %v1683 = vsel %vm1402, %v1667, 0.0
        %1684 = vadd.xlane.f32.xlu0 %v1683
        %v1685 = vpop.xlane.xlu0 %1684
        %v1686 = vsel %vm1402, %v1668, 0.0
        %1687 = vadd.xlane.f32.xlu0 %v1686
        %v1688 = vpop.xlane.xlu0 %1687
        %v1689 = vsel %vm1402, %v1669, 0.0
        %1690 = vadd.xlane.f32.xlu0 %v1689
        %v1691 = vpop.xlane.xlu0 %1690
        %v1692 = vsel %vm1402, %v1670, 0.0
        %1693 = vadd.xlane.f32.xlu0 %v1692
        %v1694 = vpop.xlane.xlu0 %1693
        %v1695 = vsel %vm1402, %v1671, 0.0
        %1696 = vadd.xlane.f32.xlu0 %v1695
        %v1697 = vpop.xlane.xlu0 %1696
        %v1698 = vsel %vm1402, %v1672, 0.0
        %1699 = vadd.xlane.f32.xlu0 %v1698
        %v1700 = vpop.xlane.xlu0 %1699
        %v1701 = vsel %vm1402, %v1673, 0.0
        %1702 = vadd.xlane.f32.xlu0 %v1701
        %v1703 = vpop.xlane.xlu0 %1702
        %v1704 = vsel %vm1402, %v1674, 0.0
        %1705 = vadd.xlane.f32.xlu0 %v1704
        %v1706 = vpop.xlane.xlu0 %1705
        %v1707 = vsel %vm1402, %v1675, 0.0
        %1708 = vadd.xlane.f32.xlu0 %v1707
        %v1709 = vpop.xlane.xlu0 %1708
        %v1710 = vsel %vm1402, %v1676, 0.0
        %1711 = vadd.xlane.f32.xlu0 %v1710
        %v1712 = vpop.xlane.xlu0 %1711
        %v1713 = vsel %vm1402, %v1677, 0.0
        %1714 = vadd.xlane.f32.xlu0 %v1713
        %v1715 = vpop.xlane.xlu0 %1714
        %v1716 = vsel %vm1402, %v1678, 0.0
        %1717 = vadd.xlane.f32.xlu0 %v1716
        %v1718 = vpop.xlane.xlu0 %1717
        %v1719 = vsel %vm1402, %v1679, 0.0
        %1720 = vadd.xlane.f32.xlu0 %v1719
        %v1721 = vpop.xlane.xlu0 %1720
        %v1722 = vsel %vm1402, %v1680, 0.0
        %1723 = vadd.xlane.f32.xlu0 %v1722
        %v1724 = vpop.xlane.xlu0 %1723
        %v1725 = vsel %vm1402, %v1681, 0.0
        %1726 = vadd.xlane.f32.xlu0 %v1725
        %v1727 = vpop.xlane.xlu0 %1726
        %v1728 = vsel %vm1402, %v1682, 0.0
        %1729 = vadd.xlane.f32.xlu0 %v1728
        %v1730 = vpop.xlane.xlu0 %1729
        %v1731 = vrcp.pop %v1685
        %v1732 = vrcp.pop %v1688
        %v1733 = vrcp.pop %v1691
        %v1734 = vrcp.pop %v1694
        %v1735 = vrcp.pop %v1697
        %v1736 = vrcp.pop %v1700
        %v1737 = vrcp.pop %v1703
        %v1738 = vrcp.pop %v1706
        %v1739 = vrcp.pop %v1709
        %v1740 = vrcp.pop %v1712
        %v1741 = vrcp.pop %v1715
        %v1742 = vrcp.pop %v1718
        %v1743 = vrcp.pop %v1721
        %v1744 = vrcp.pop %v1724
        %v1745 = vrcp.pop %v1727
        %v1746 = vrcp.pop %v1730
        %v1747 = vmul.f32 %v1667, %v1731
        %v1748 = vmul.f32 %v1668, %v1732
        %v1749 = vmul.f32 %v1669, %v1733
        %v1750 = vmul.f32 %v1670, %v1734
        %v1751 = vmul.f32 %v1671, %v1735
        %v1752 = vmul.f32 %v1672, %v1736
        %v1753 = vmul.f32 %v1673, %v1737
        %v1754 = vmul.f32 %v1674, %v1738
        %v1755 = vmul.f32 %v1675, %v1739
        %v1756 = vmul.f32 %v1676, %v1740
        %v1757 = vmul.f32 %v1677, %v1741
        %v1758 = vmul.f32 %v1678, %v1742
        %v1759 = vmul.f32 %v1679, %v1743
        %v1760 = vmul.f32 %v1680, %v1744
        %v1761 = vmul.f32 %v1681, %v1745
        %v1762 = vmul.f32 %v1682, %v1746
        %v1763 = vpack.c.bf16 %v1748, %v1747
        %v1764 = vpack.c.bf16 %v1750, %v1749
        %v1765 = vpack.c.bf16 %v1752, %v1751
        %v1766 = vpack.c.bf16 %v1754, %v1753
        %v1767 = vpack.c.bf16 %v1756, %v1755
        %v1768 = vpack.c.bf16 %v1758, %v1757
        %v1769 = vpack.c.bf16 %v1760, %v1759
        %v1770 = vpack.c.bf16 %v1762, %v1761
        %v1772 = vsel %vm1402, %v888, 0
        %v1775 = vsel %vm1402, %v1763, 0
        %1777 = vmatprep.subr.bf16.mxu0 0
        %1778 = vmatpush1.bf16.xpose.msra.mxu0 0
        %1779 = vmatprep.subr.bf16.mxu0 0
        %1780 = vmatpush1.bf16.xpose.msra.mxu0 0
        %1781 = vmatprep.subr.bf16.mxu0 0
        %1782 = vmatpush1.bf16.xpose.msra.mxu0 0
        %1783 = vmatprep.subr.bf16.mxu0 0
        %1784 = vmatpush1.bf16.xpose.msra.mxu0 0
        %1785 = vmatprep.subr.bf16.mxu0 0
        %1786 = vmatpush1.bf16.xpose.msra.mxu0 0
        %1787 = vmatprep.subr.bf16.mxu0 0
        %1788 = vmatpush1.bf16.xpose.msra.mxu0 0
        %1789 = vmatprep.subr.bf16.mxu0 0
        %1790 = vmatpush1.bf16.xpose.msra.mxu0 0
        %1791 = vmatprep.subr.bf16.mxu0 0
        %1792 = vmatpush1.bf16.xpose.msra.mxu0 %v1775
        %1793 = vmatprep.subr.bf16.mxu0 0
        %1794 = vmatpush2.bf16.xpose.msra.mxu0 0
        %1795 = vmatprep.subr.bf16.mxu0 0
        %1796 = vmatpush2.bf16.xpose.msra.mxu0 0
        %1797 = vmatprep.subr.bf16.mxu0 0
        %1798 = vmatpush2.bf16.xpose.msra.mxu0 0
        %1799 = vmatprep.subr.bf16.mxu0 0
        %1800 = vmatpush2.bf16.xpose.msra.mxu0 0
        %1801 = vmatprep.subr.bf16.mxu0 0
        %1802 = vmatpush2.bf16.xpose.msra.mxu0 0
        %1803 = vmatprep.subr.bf16.mxu0 0
        %1804 = vmatpush2.bf16.xpose.msra.mxu0 0
        %1805 = vmatprep.subr.bf16.mxu0 0
        %1806 = vmatpush2.bf16.xpose.msra.mxu0 0
        %1807 = vmatprep.subr.bf16.mxu0 0
        %1808 = vmatpush2.bf16.xpose.msra.mxu0 0
        %1809 = vmatprep.mubr.bf16.mxu0 0
        %1810 = vmatmul.mubr.bf16.gmra.mxu0 %v1772
        %v1811 = vpop.f32.mrf.mxu0
        %v1812 = vadd.f32 0.0, %v1811
        %v1813 = vpop.f32.mrf.mxu0
        %v1814 = vpop.f32.mrf.mxu0
        %v1815 = vpop.f32.mrf.mxu0
        %1816 = vdwg.mxu0
        %v1818 = vsel %vm1402, %v889, 0
        %v1821 = vsel %vm1402, %v1764, 0
        %1823 = vmatprep.subr.bf16.mxu0 0
        %1824 = vmatpush1.bf16.xpose.msra.mxu0 0
        %1825 = vmatprep.subr.bf16.mxu0 0
        %1826 = vmatpush1.bf16.xpose.msra.mxu0 0
        %1827 = vmatprep.subr.bf16.mxu0 0
        %1828 = vmatpush1.bf16.xpose.msra.mxu0 0
        %1829 = vmatprep.subr.bf16.mxu0 0
        %1830 = vmatpush1.bf16.xpose.msra.mxu0 0
        %1831 = vmatprep.subr.bf16.mxu0 0
        %1832 = vmatpush1.bf16.xpose.msra.mxu0 0
        %1833 = vmatprep.subr.bf16.mxu0 0
        %1834 = vmatpush1.bf16.xpose.msra.mxu0 0
        %1835 = vmatprep.subr.bf16.mxu0 0
        %1836 = vmatpush1.bf16.xpose.msra.mxu0 0
        %1837 = vmatprep.subr.bf16.mxu0 0
        %1838 = vmatpush1.bf16.xpose.msra.mxu0 %v1821
        %1839 = vmatprep.subr.bf16.mxu0 0
        %1840 = vmatpush2.bf16.xpose.msra.mxu0 0
        %1841 = vmatprep.subr.bf16.mxu0 0
        %1842 = vmatpush2.bf16.xpose.msra.mxu0 0
        %1843 = vmatprep.subr.bf16.mxu0 0
        %1844 = vmatpush2.bf16.xpose.msra.mxu0 0
        %1845 = vmatprep.subr.bf16.mxu0 0
        %1846 = vmatpush2.bf16.xpose.msra.mxu0 0
        %1847 = vmatprep.subr.bf16.mxu0 0
        %1848 = vmatpush2.bf16.xpose.msra.mxu0 0
        %1849 = vmatprep.subr.bf16.mxu0 0
        %1850 = vmatpush2.bf16.xpose.msra.mxu0 0
        %1851 = vmatprep.subr.bf16.mxu0 0
        %1852 = vmatpush2.bf16.xpose.msra.mxu0 0
        %1853 = vmatprep.subr.bf16.mxu0 0
        %1854 = vmatpush2.bf16.xpose.msra.mxu0 0
        %1855 = vmatprep.mubr.bf16.mxu0 0
        %1856 = vmatmul.mubr.bf16.gmra.mxu0 %v1818
        %v1857 = vpop.f32.mrf.mxu0
        %v1858 = vadd.f32 0.0, %v1857
        %v1859 = vpop.f32.mrf.mxu0
        %v1860 = vpop.f32.mrf.mxu0
        %v1861 = vpop.f32.mrf.mxu0
        %1862 = vdwg.mxu0
        %v1864 = vsel %vm1402, %v890, 0
        %v1867 = vsel %vm1402, %v1765, 0
        %1869 = vmatprep.subr.bf16.mxu0 0
        %1870 = vmatpush1.bf16.xpose.msra.mxu0 0
        %1871 = vmatprep.subr.bf16.mxu0 0
        %1872 = vmatpush1.bf16.xpose.msra.mxu0 0
        %1873 = vmatprep.subr.bf16.mxu0 0
        %1874 = vmatpush1.bf16.xpose.msra.mxu0 0
        %1875 = vmatprep.subr.bf16.mxu0 0
        %1876 = vmatpush1.bf16.xpose.msra.mxu0 0
        %1877 = vmatprep.subr.bf16.mxu0 0
        %1878 = vmatpush1.bf16.xpose.msra.mxu0 0
        %1879 = vmatprep.subr.bf16.mxu0 0
        %1880 = vmatpush1.bf16.xpose.msra.mxu0 0
        %1881 = vmatprep.subr.bf16.mxu0 0
        %1882 = vmatpush1.bf16.xpose.msra.mxu0 0
        %1883 = vmatprep.subr.bf16.mxu0 0
        %1884 = vmatpush1.bf16.xpose.msra.mxu0 %v1867
        %1885 = vmatprep.subr.bf16.mxu0 0
        %1886 = vmatpush2.bf16.xpose.msra.mxu0 0
        %1887 = vmatprep.subr.bf16.mxu0 0
        %1888 = vmatpush2.bf16.xpose.msra.mxu0 0
        %1889 = vmatprep.subr.bf16.mxu0 0
        %1890 = vmatpush2.bf16.xpose.msra.mxu0 0
        %1891 = vmatprep.subr.bf16.mxu0 0
        %1892 = vmatpush2.bf16.xpose.msra.mxu0 0
        %1893 = vmatprep.subr.bf16.mxu0 0
        %1894 = vmatpush2.bf16.xpose.msra.mxu0 0
        %1895 = vmatprep.subr.bf16.mxu0 0
        %1896 = vmatpush2.bf16.xpose.msra.mxu0 0
        %1897 = vmatprep.subr.bf16.mxu0 0
        %1898 = vmatpush2.bf16.xpose.msra.mxu0 0
        %1899 = vmatprep.subr.bf16.mxu0 0
        %1900 = vmatpush2.bf16.xpose.msra.mxu0 0
        %1901 = vmatprep.mubr.bf16.mxu0 0
        %1902 = vmatmul.mubr.bf16.gmra.mxu0 %v1864
        %v1903 = vpop.f32.mrf.mxu0
        %v1904 = vadd.f32 0.0, %v1903
        %v1905 = vpop.f32.mrf.mxu0
        %v1906 = vpop.f32.mrf.mxu0
        %v1907 = vpop.f32.mrf.mxu0
        %1908 = vdwg.mxu0
        %v1910 = vsel %vm1402, %v891, 0
        %v1913 = vsel %vm1402, %v1766, 0
        %1915 = vmatprep.subr.bf16.mxu0 0
        %1916 = vmatpush1.bf16.xpose.msra.mxu0 0
        %1917 = vmatprep.subr.bf16.mxu0 0
        %1918 = vmatpush1.bf16.xpose.msra.mxu0 0
        %1919 = vmatprep.subr.bf16.mxu0 0
        %1920 = vmatpush1.bf16.xpose.msra.mxu0 0
        %1921 = vmatprep.subr.bf16.mxu0 0
        %1922 = vmatpush1.bf16.xpose.msra.mxu0 0
        %1923 = vmatprep.subr.bf16.mxu0 0
        %1924 = vmatpush1.bf16.xpose.msra.mxu0 0
        %1925 = vmatprep.subr.bf16.mxu0 0
        %1926 = vmatpush1.bf16.xpose.msra.mxu0 0
        %1927 = vmatprep.subr.bf16.mxu0 0
        %1928 = vmatpush1.bf16.xpose.msra.mxu0 0
        %1929 = vmatprep.subr.bf16.mxu0 0
        %1930 = vmatpush1.bf16.xpose.msra.mxu0 %v1913
        %1931 = vmatprep.subr.bf16.mxu0 0
        %1932 = vmatpush2.bf16.xpose.msra.mxu0 0
        %1933 = vmatprep.subr.bf16.mxu0 0
        %1934 = vmatpush2.bf16.xpose.msra.mxu0 0
        %1935 = vmatprep.subr.bf16.mxu0 0
        %1936 = vmatpush2.bf16.xpose.msra.mxu0 0
        %1937 = vmatprep.subr.bf16.mxu0 0
        %1938 = vmatpush2.bf16.xpose.msra.mxu0 0
        %1939 = vmatprep.subr.bf16.mxu0 0
        %1940 = vmatpush2.bf16.xpose.msra.mxu0 0
        %1941 = vmatprep.subr.bf16.mxu0 0
        %1942 = vmatpush2.bf16.xpose.msra.mxu0 0
        %1943 = vmatprep.subr.bf16.mxu0 0
        %1944 = vmatpush2.bf16.xpose.msra.mxu0 0
        %1945 = vmatprep.subr.bf16.mxu0 0
        %1946 = vmatpush2.bf16.xpose.msra.mxu0 0
        %1947 = vmatprep.mubr.bf16.mxu0 0
        %1948 = vmatmul.mubr.bf16.gmra.mxu0 %v1910
        %v1949 = vpop.f32.mrf.mxu0
        %v1950 = vadd.f32 0.0, %v1949
        %v1951 = vpop.f32.mrf.mxu0
        %v1952 = vpop.f32.mrf.mxu0
        %v1953 = vpop.f32.mrf.mxu0
        %1954 = vdwg.mxu0
        %v1956 = vsel %vm1402, %v892, 0
        %v1959 = vsel %vm1402, %v1767, 0
        %1961 = vmatprep.subr.bf16.mxu0 0
        %1962 = vmatpush1.bf16.xpose.msra.mxu0 0
        %1963 = vmatprep.subr.bf16.mxu0 0
        %1964 = vmatpush1.bf16.xpose.msra.mxu0 0
        %1965 = vmatprep.subr.bf16.mxu0 0
        %1966 = vmatpush1.bf16.xpose.msra.mxu0 0
        %1967 = vmatprep.subr.bf16.mxu0 0
        %1968 = vmatpush1.bf16.xpose.msra.mxu0 0
        %1969 = vmatprep.subr.bf16.mxu0 0
        %1970 = vmatpush1.bf16.xpose.msra.mxu0 0
        %1971 = vmatprep.subr.bf16.mxu0 0
        %1972 = vmatpush1.bf16.xpose.msra.mxu0 0
        %1973 = vmatprep.subr.bf16.mxu0 0
        %1974 = vmatpush1.bf16.xpose.msra.mxu0 0
        %1975 = vmatprep.subr.bf16.mxu0 0
        %1976 = vmatpush1.bf16.xpose.msra.mxu0 %v1959
        %1977 = vmatprep.subr.bf16.mxu0 0
        %1978 = vmatpush2.bf16.xpose.msra.mxu0 0
        %1979 = vmatprep.subr.bf16.mxu0 0
        %1980 = vmatpush2.bf16.xpose.msra.mxu0 0
        %1981 = vmatprep.subr.bf16.mxu0 0
        %1982 = vmatpush2.bf16.xpose.msra.mxu0 0
        %1983 = vmatprep.subr.bf16.mxu0 0
        %1984 = vmatpush2.bf16.xpose.msra.mxu0 0
        %1985 = vmatprep.subr.bf16.mxu0 0
        %1986 = vmatpush2.bf16.xpose.msra.mxu0 0
        %1987 = vmatprep.subr.bf16.mxu0 0
        %1988 = vmatpush2.bf16.xpose.msra.mxu0 0
        %1989 = vmatprep.subr.bf16.mxu0 0
        %1990 = vmatpush2.bf16.xpose.msra.mxu0 0
        %1991 = vmatprep.subr.bf16.mxu0 0
        %1992 = vmatpush2.bf16.xpose.msra.mxu0 0
        %1993 = vmatprep.mubr.bf16.mxu0 0
        %1994 = vmatmul.mubr.bf16.gmra.mxu0 %v1956
        %v1995 = vpop.f32.mrf.mxu0
        %v1996 = vadd.f32 0.0, %v1995
        %v1997 = vpop.f32.mrf.mxu0
        %v1998 = vpop.f32.mrf.mxu0
        %v1999 = vpop.f32.mrf.mxu0
        %2000 = vdwg.mxu0
        %v2002 = vsel %vm1402, %v893, 0
        %v2005 = vsel %vm1402, %v1768, 0
        %2007 = vmatprep.subr.bf16.mxu0 0
        %2008 = vmatpush1.bf16.xpose.msra.mxu0 0
        %2009 = vmatprep.subr.bf16.mxu0 0
        %2010 = vmatpush1.bf16.xpose.msra.mxu0 0
        %2011 = vmatprep.subr.bf16.mxu0 0
        %2012 = vmatpush1.bf16.xpose.msra.mxu0 0
        %2013 = vmatprep.subr.bf16.mxu0 0
        %2014 = vmatpush1.bf16.xpose.msra.mxu0 0
        %2015 = vmatprep.subr.bf16.mxu0 0
        %2016 = vmatpush1.bf16.xpose.msra.mxu0 0
        %2017 = vmatprep.subr.bf16.mxu0 0
        %2018 = vmatpush1.bf16.xpose.msra.mxu0 0
        %2019 = vmatprep.subr.bf16.mxu0 0
        %2020 = vmatpush1.bf16.xpose.msra.mxu0 0
        %2021 = vmatprep.subr.bf16.mxu0 0
        %2022 = vmatpush1.bf16.xpose.msra.mxu0 %v2005
        %2023 = vmatprep.subr.bf16.mxu0 0
        %2024 = vmatpush2.bf16.xpose.msra.mxu0 0
        %2025 = vmatprep.subr.bf16.mxu0 0
        %2026 = vmatpush2.bf16.xpose.msra.mxu0 0
        %2027 = vmatprep.subr.bf16.mxu0 0
        %2028 = vmatpush2.bf16.xpose.msra.mxu0 0
        %2029 = vmatprep.subr.bf16.mxu0 0
        %2030 = vmatpush2.bf16.xpose.msra.mxu0 0
        %2031 = vmatprep.subr.bf16.mxu0 0
        %2032 = vmatpush2.bf16.xpose.msra.mxu0 0
        %2033 = vmatprep.subr.bf16.mxu0 0
        %2034 = vmatpush2.bf16.xpose.msra.mxu0 0
        %2035 = vmatprep.subr.bf16.mxu0 0
        %2036 = vmatpush2.bf16.xpose.msra.mxu0 0
        %2037 = vmatprep.subr.bf16.mxu0 0
        %2038 = vmatpush2.bf16.xpose.msra.mxu0 0
        %2039 = vmatprep.mubr.bf16.mxu0 0
        %2040 = vmatmul.mubr.bf16.gmra.mxu0 %v2002
        %v2041 = vpop.f32.mrf.mxu0
        %v2042 = vadd.f32 0.0, %v2041
        %v2043 = vpop.f32.mrf.mxu0
        %v2044 = vpop.f32.mrf.mxu0
        %v2045 = vpop.f32.mrf.mxu0
        %2046 = vdwg.mxu0
        %v2048 = vsel %vm1402, %v894, 0
        %v2051 = vsel %vm1402, %v1769, 0
        %2053 = vmatprep.subr.bf16.mxu0 0
        %2054 = vmatpush1.bf16.xpose.msra.mxu0 0
        %2055 = vmatprep.subr.bf16.mxu0 0
        %2056 = vmatpush1.bf16.xpose.msra.mxu0 0
        %2057 = vmatprep.subr.bf16.mxu0 0
        %2058 = vmatpush1.bf16.xpose.msra.mxu0 0
        %2059 = vmatprep.subr.bf16.mxu0 0
        %2060 = vmatpush1.bf16.xpose.msra.mxu0 0
        %2061 = vmatprep.subr.bf16.mxu0 0
        %2062 = vmatpush1.bf16.xpose.msra.mxu0 0
        %2063 = vmatprep.subr.bf16.mxu0 0
        %2064 = vmatpush1.bf16.xpose.msra.mxu0 0
        %2065 = vmatprep.subr.bf16.mxu0 0
        %2066 = vmatpush1.bf16.xpose.msra.mxu0 0
        %2067 = vmatprep.subr.bf16.mxu0 0
        %2068 = vmatpush1.bf16.xpose.msra.mxu0 %v2051
        %2069 = vmatprep.subr.bf16.mxu0 0
        %2070 = vmatpush2.bf16.xpose.msra.mxu0 0
        %2071 = vmatprep.subr.bf16.mxu0 0
        %2072 = vmatpush2.bf16.xpose.msra.mxu0 0
        %2073 = vmatprep.subr.bf16.mxu0 0
        %2074 = vmatpush2.bf16.xpose.msra.mxu0 0
        %2075 = vmatprep.subr.bf16.mxu0 0
        %2076 = vmatpush2.bf16.xpose.msra.mxu0 0
        %2077 = vmatprep.subr.bf16.mxu0 0
        %2078 = vmatpush2.bf16.xpose.msra.mxu0 0
        %2079 = vmatprep.subr.bf16.mxu0 0
        %2080 = vmatpush2.bf16.xpose.msra.mxu0 0
        %2081 = vmatprep.subr.bf16.mxu0 0
        %2082 = vmatpush2.bf16.xpose.msra.mxu0 0
        %2083 = vmatprep.subr.bf16.mxu0 0
        %2084 = vmatpush2.bf16.xpose.msra.mxu0 0
        %2085 = vmatprep.mubr.bf16.mxu0 0
        %2086 = vmatmul.mubr.bf16.gmra.mxu0 %v2048
        %v2087 = vpop.f32.mrf.mxu0
        %v2088 = vadd.f32 0.0, %v2087
        %v2089 = vpop.f32.mrf.mxu0
        %v2090 = vpop.f32.mrf.mxu0
        %v2091 = vpop.f32.mrf.mxu0
        %2092 = vdwg.mxu0
        %v2094 = vsel %vm1402, %v895, 0
        %v2097 = vsel %vm1402, %v1770, 0
        %2099 = vmatprep.subr.bf16.mxu0 0
        %2100 = vmatpush1.bf16.xpose.msra.mxu0 0
        %2101 = vmatprep.subr.bf16.mxu0 0
        %2102 = vmatpush1.bf16.xpose.msra.mxu0 0
        %2103 = vmatprep.subr.bf16.mxu0 0
        %2104 = vmatpush1.bf16.xpose.msra.mxu0 0
        %2105 = vmatprep.subr.bf16.mxu0 0
        %2106 = vmatpush1.bf16.xpose.msra.mxu0 0
        %2107 = vmatprep.subr.bf16.mxu0 0
        %2108 = vmatpush1.bf16.xpose.msra.mxu0 0
        %2109 = vmatprep.subr.bf16.mxu0 0
        %2110 = vmatpush1.bf16.xpose.msra.mxu0 0
        %2111 = vmatprep.subr.bf16.mxu0 0
        %2112 = vmatpush1.bf16.xpose.msra.mxu0 0
        %2113 = vmatprep.subr.bf16.mxu0 0
        %2114 = vmatpush1.bf16.xpose.msra.mxu0 %v2097
        %2115 = vmatprep.subr.bf16.mxu0 0
        %2116 = vmatpush2.bf16.xpose.msra.mxu0 0
        %2117 = vmatprep.subr.bf16.mxu0 0
        %2118 = vmatpush2.bf16.xpose.msra.mxu0 0
        %2119 = vmatprep.subr.bf16.mxu0 0
        %2120 = vmatpush2.bf16.xpose.msra.mxu0 0
        %2121 = vmatprep.subr.bf16.mxu0 0
        %2122 = vmatpush2.bf16.xpose.msra.mxu0 0
        %2123 = vmatprep.subr.bf16.mxu0 0
        %2124 = vmatpush2.bf16.xpose.msra.mxu0 0
        %2125 = vmatprep.subr.bf16.mxu0 0
        %2126 = vmatpush2.bf16.xpose.msra.mxu0 0
        %2127 = vmatprep.subr.bf16.mxu0 0
        %2128 = vmatpush2.bf16.xpose.msra.mxu0 0
        %2129 = vmatprep.subr.bf16.mxu0 0
        %2130 = vmatpush2.bf16.xpose.msra.mxu0 0
        %2131 = vmatprep.mubr.bf16.mxu0 0
        %2132 = vmatmul.mubr.bf16.gmra.mxu0 %v2094
        %v2133 = vpop.f32.mrf.mxu0
        %v2134 = vadd.f32 0.0, %v2133
        %v2135 = vpop.f32.mrf.mxu0
        %v2136 = vpop.f32.mrf.mxu0
        %v2137 = vpop.f32.mrf.mxu0
        %2138 = vdwg.mxu0
        %v2139 = vpack.c.bf16 %v1812, %v1812
        %v2140 = vpack.c.bf16 %v1858, %v1858
        %v2141 = vpack.c.bf16 %v1904, %v1904
        %v2142 = vpack.c.bf16 %v1950, %v1950
        %v2143 = vpack.c.bf16 %v1996, %v1996
        %v2144 = vpack.c.bf16 %v2042, %v2042
        %v2145 = vpack.c.bf16 %v2088, %v2088
        %v2146 = vpack.c.bf16 %v2134, %v2134
        %v2155 = vunpack.c.l.b16 %v2139
        %v2156 = vunpack.c.l.b16 %v2140
        %v2157 = vunpack.c.l.b16 %v2141
        %v2158 = vunpack.c.l.b16 %v2142
        %v2159 = vunpack.c.l.b16 %v2143
        %v2160 = vunpack.c.l.b16 %v2144
        %v2161 = vunpack.c.l.b16 %v2145
        %v2162 = vunpack.c.l.b16 %v2146
        %v2163 = vpack.c.b16 %v2156, %v2155
        %v2164 = vpack.c.b16 %v2158, %v2157
        %v2165 = vpack.c.b16 %v2160, %v2159
        %v2166 = vpack.c.b16 %v2162, %v2161
        %2171 = vxpose.xlu0.c.b16.start [1/8] %v2163, 128
        %2172 = vxpose.xlu0.c.b16.cont [2/8] %v2164, 128
        %2173 = vxpose.xlu0.c.b16.cont [3/8] %v2165, 128
        %2174 = vxpose.xlu0.c.b16.cont [4/8] %v2166, 128
        %2175 = vxpose.xlu0.c.b16.cont [5/8] 0, 128
        %2176 = vxpose.xlu0.c.b16.cont [6/8] 0, 128
        %2177 = vxpose.xlu0.c.b16.cont [7/8] 0, 128
        %2178 = vxpose.xlu0.c.b16.end [8/8] 0, 128
        %v2179 = vpop.trf.xlu0
        %v2180 = vpop.trf.xlu0
        %v2181 = vpop.trf.xlu0
        %v2182 = vpop.trf.xlu0
        %v2183 = vpop.trf.xlu0
        %v2184 = vpop.trf.xlu0
        %v2185 = vpop.trf.xlu0
        %v2186 = vpop.trf.xlu0
        %v2195 = vunpack.c.l.b16 %v540
        %v2196 = vunpack.c.l.b16 %v541
        %v2197 = vunpack.c.l.b16 %v542
        %v2198 = vunpack.c.l.b16 %v543
        %v2199 = vunpack.c.l.b16 %v544
        %v2200 = vunpack.c.l.b16 %v545
        %v2201 = vunpack.c.l.b16 %v546
        %v2202 = vunpack.c.l.b16 %v547
        %v2203 = vpack.c.b16 %v2196, %v2195
        %v2204 = vpack.c.b16 %v2198, %v2197
        %v2205 = vpack.c.b16 %v2200, %v2199
        %v2206 = vpack.c.b16 %v2202, %v2201
        %v2212 = vsel %vm469, %v2179, 0
        %2214 = vmatprep.subr.bf16.mxu0 0
        %2215 = vmatpush1.bf16.msra.mxu0 0
        %2216 = vmatprep.subr.bf16.mxu0 0
        %2217 = vmatpush1.bf16.msra.mxu0 0
        %2218 = vmatprep.subr.bf16.mxu0 0
        %2219 = vmatpush1.bf16.msra.mxu0 0
        %2220 = vmatprep.subr.bf16.mxu0 0
        %2221 = vmatpush1.bf16.msra.mxu0 0
        %2222 = vmatprep.subr.bf16.mxu0 0
        %2223 = vmatpush1.bf16.msra.mxu0 %v2206
        %2224 = vmatprep.subr.bf16.mxu0 0
        %2225 = vmatpush1.bf16.msra.mxu0 %v2205
        %2226 = vmatprep.subr.bf16.mxu0 0
        %2227 = vmatpush1.bf16.msra.mxu0 %v2204
        %2228 = vmatprep.subr.bf16.mxu0 0
        %2229 = vmatpush1.bf16.msra.mxu0 %v2203
        %2230 = vmatprep.subr.bf16.mxu0 0
        %2231 = vmatpush2.bf16.msra.mxu0 0
        %2232 = vmatprep.subr.bf16.mxu0 0
        %2233 = vmatpush2.bf16.msra.mxu0 0
        %2234 = vmatprep.subr.bf16.mxu0 0
        %2235 = vmatpush2.bf16.msra.mxu0 0
        %2236 = vmatprep.subr.bf16.mxu0 0
        %2237 = vmatpush2.bf16.msra.mxu0 0
        %2238 = vmatprep.subr.bf16.mxu0 0
        %2239 = vmatpush2.bf16.msra.mxu0 0
        %2240 = vmatprep.subr.bf16.mxu0 0
        %2241 = vmatpush2.bf16.msra.mxu0 0
        %2242 = vmatprep.subr.bf16.mxu0 0
        %2243 = vmatpush2.bf16.msra.mxu0 0
        %2244 = vmatprep.subr.bf16.mxu0 0
        %2245 = vmatpush2.bf16.msra.mxu0 0
        %2246 = vmatprep.mubr.bf16.mxu0 0
        %2247 = vmatmul.mubr.bf16.gmra.mxu0 %v2212
        %v2248 = vpop.f32.mrf.mxu0
        %v2249 = vadd.f32 0.0, %v2248
        %v2250 = vpop.f32.mrf.mxu0
        %v2251 = vpop.f32.mrf.mxu0
        %v2252 = vadd.f32 0.0, %v2251
        %v2253 = vpop.f32.mrf.mxu0
        %2254 = vdwg.mxu0
        %v2255 = vadd.f32 %v467, %v2249
        %v2256 = vadd.f32 %v468, %v2252
        %v2257 = vld [vmem:[%s7] sm:$0x1]
        %v2259 = vlaneseq
        %v2260 = vshrl.u32 %v2259, 7
        %v2261 = vsub.s32 0, %v2260
        %v2262 = vrot.slane %v2257, %v2261
        %v2264 = vadd.f32 %v2255, %v2262
        %v2265 = vadd.f32 %v2256, %v2262
        %v2266 = vsel %vm469, %v2264, 0.0
        %2267 = vadd.xlane.f32.xlu0 %v2266
        %v2268 = vpop.xlane.xlu0 %2267
        %v2269 = vsel %vm469, %v2265, 0.0
        %2270 = vadd.xlane.f32.xlu0 %v2269
        %v2271 = vpop.xlane.xlu0 %2270
        %v2272 = vmul.f32 %v2268, %v476
        %v2273 = vmul.f32 %v2271, %v476
        %v2274 = vsub.f32 %v2264, %v2272
        %v2275 = vsub.f32 %v2265, %v2273
        %v2276 = vmul.f32 %v2274, %v2274
        %v2277 = vmul.f32 %v2275, %v2275
        %v2278 = vsel %vm469, %v2276, 0.0
        %2279 = vadd.xlane.f32.xlu0 %v2278
        %v2280 = vpop.xlane.xlu0 %2279
        %v2281 = vsel %vm469, %v2277, 0.0
        %2282 = vadd.xlane.f32.xlu0 %v2281
        %v2283 = vpop.xlane.xlu0 %2282
        %v2284 = vmul.f32 %v2280, %v476
        %v2285 = vmul.f32 %v2283, %v476
        %v2286 = vadd.f32 %v2284, 1e-05
        %v2287 = vadd.f32 %v2285, 1e-05
        %v2288 = vrsqrt.pop %v2286
        %v2289 = vrsqrt.pop %v2287
        %v2290 = vmul.f32 %v2274, %v2288
        %v2291 = vmul.f32 %v2275, %v2289
        %v2292 = vld [vmem:[%s8] sm:$0x1]
        %v2294 = vlaneseq
        %v2295 = vshrl.u32 %v2294, 7
        %v2296 = vsub.s32 0, %v2295
        %v2297 = vrot.slane %v2292, %v2296
        %v2299 = vmul.f32 %v2290, %v2297
        %v2300 = vmul.f32 %v2291, %v2297
        %v2301 = vld [vmem:[%s9] sm:$0x1]
        %v2303 = vlaneseq
        %v2304 = vshrl.u32 %v2303, 7
        %v2305 = vsub.s32 0, %v2304
        %v2306 = vrot.slane %v2301, %v2305
        %v2308 = vadd.f32 %v2299, %v2306
        %v2309 = vadd.f32 %v2300, %v2306
        %v2310 = vpack.c.bf16 %v2309, %v2308
        %v2311 = vld [vmem:[%s10] sm:$0xff]
        %v2312 = vld [vmem:[%s10 + $0x8] sm:$0xff]
        %v2313 = vld [vmem:[%s10 + $0x10] sm:$0xff]
        %v2314 = vld [vmem:[%s10 + $0x18] sm:$0xff]
        %v2315 = vld [vmem:[%s10 + $0x20] sm:$0xff]
        %v2316 = vld [vmem:[%s10 + $0x28] sm:$0xff]
        %v2317 = vld [vmem:[%s10 + $0x30] sm:$0xff]
        %v2318 = vld [vmem:[%s10 + $0x38] sm:$0xff]
        %v2319 = vld [vmem:[%s11] sm:$0x3]
        %v2321 = vlaneseq
        %v2322 = vshrl.u32 %v2321, 7
        %v2323 = vsub.s32 0, %v2322
        %v2324 = vrot.slane %v2319, %v2323
        %v2325 = vlaneseq
        %v2326 = vshrl.u32 %v2325, 7
        %v2327 = vsub.s32 1, %v2326
        %v2328 = vrot.slane %v2319, %v2327
        %v2339 = vunpack.c.l.b16 %v2311
        %v2340 = vunpack.c.h.b16 %v2311
        %v2341 = vunpack.c.l.b16 %v2312
        %v2342 = vunpack.c.h.b16 %v2312
        %v2343 = vunpack.c.l.b16 %v2313
        %v2344 = vunpack.c.h.b16 %v2313
        %v2345 = vunpack.c.l.b16 %v2314
        %v2346 = vunpack.c.h.b16 %v2314
        %v2347 = vunpack.c.l.b16 %v2315
        %v2348 = vunpack.c.h.b16 %v2315
        %v2349 = vunpack.c.l.b16 %v2316
        %v2350 = vunpack.c.h.b16 %v2316
        %v2351 = vunpack.c.l.b16 %v2317
        %v2352 = vunpack.c.h.b16 %v2317
        %v2353 = vunpack.c.l.b16 %v2318
        %v2354 = vunpack.c.h.b16 %v2318
        %v2355 = vpack.c.b16 %v2341, %v2339
        %v2356 = vpack.c.b16 %v2342, %v2340
        %v2357 = vpack.c.b16 %v2345, %v2343
        %v2358 = vpack.c.b16 %v2346, %v2344
        %v2359 = vpack.c.b16 %v2349, %v2347
        %v2360 = vpack.c.b16 %v2350, %v2348
        %v2361 = vpack.c.b16 %v2353, %v2351
        %v2362 = vpack.c.b16 %v2354, %v2352
        %v2372 = vsel %vm469, %v2310, 0
        %2374 = vmatprep.subr.bf16.mxu0 0
        %2375 = vmatpush1.bf16.msra.mxu0 0
        %2376 = vmatprep.subr.bf16.mxu0 0
        %2377 = vmatpush1.bf16.msra.mxu0 0
        %2378 = vmatprep.subr.bf16.mxu0 0
        %2379 = vmatpush1.bf16.msra.mxu0 0
        %2380 = vmatprep.subr.bf16.mxu0 0
        %2381 = vmatpush1.bf16.msra.mxu0 0
        %2382 = vmatprep.subr.bf16.mxu0 %v2362
        %2383 = vmatpush1.bf16.msra.mxu0 %v2361
        %2384 = vmatprep.subr.bf16.mxu0 %v2360
        %2385 = vmatpush1.bf16.msra.mxu0 %v2359
        %2386 = vmatprep.subr.bf16.mxu0 %v2358
        %2387 = vmatpush1.bf16.msra.mxu0 %v2357
        %2388 = vmatprep.subr.bf16.mxu0 %v2356
        %2389 = vmatpush1.bf16.msra.mxu0 %v2355
        %2390 = vmatprep.subr.bf16.mxu0 0
        %2391 = vmatpush2.bf16.msra.mxu0 0
        %2392 = vmatprep.subr.bf16.mxu0 0
        %2393 = vmatpush2.bf16.msra.mxu0 0
        %2394 = vmatprep.subr.bf16.mxu0 0
        %2395 = vmatpush2.bf16.msra.mxu0 0
        %2396 = vmatprep.subr.bf16.mxu0 0
        %2397 = vmatpush2.bf16.msra.mxu0 0
        %2398 = vmatprep.subr.bf16.mxu0 0
        %2399 = vmatpush2.bf16.msra.mxu0 0
        %2400 = vmatprep.subr.bf16.mxu0 0
        %2401 = vmatpush2.bf16.msra.mxu0 0
        %2402 = vmatprep.subr.bf16.mxu0 0
        %2403 = vmatpush2.bf16.msra.mxu0 0
        %2404 = vmatprep.subr.bf16.mxu0 0
        %2405 = vmatpush2.bf16.msra.mxu0 0
        %2406 = vmatprep.mubr.bf16.mxu0 0
        %2407 = vmatmul.mubr.bf16.gmra.mxu0 %v2372
        %v2408 = vpop.f32.mrf.mxu0
        %v2409 = vadd.f32 %v2324, %v2408
        %v2410 = vpop.f32.mrf.mxu0
        %v2411 = vadd.f32 %v2328, %v2410
        %v2412 = vpop.f32.mrf.mxu0
        %v2413 = vadd.f32 %v2324, %v2412
        %v2414 = vpop.f32.mrf.mxu0
        %v2415 = vadd.f32 %v2328, %v2414
        %2416 = vdwg.mxu0
        %v2417 = vmul.f32 %v2409, 0.5
        %v2418 = vmul.f32 %v2411, 0.5
        %v2419 = vmul.f32 %v2413, 0.5
        %v2420 = vmul.f32 %v2415, 0.5
        %v2421 = vmul.f32 %v2409, 0.70710677
        %v2422 = vmul.f32 %v2411, 0.70710677
        %v2423 = vmul.f32 %v2413, 0.70710677
        %v2424 = vmul.f32 %v2415, 0.70710677
        %v2425 = verf.f32.pop %v2421
        %v2426 = verf.f32.pop %v2422
        %v2427 = verf.f32.pop %v2423
        %v2428 = verf.f32.pop %v2424
        %v2429 = vadd.f32 %v2425, 1.0
        %v2430 = vadd.f32 %v2426, 1.0
        %v2431 = vadd.f32 %v2427, 1.0
        %v2432 = vadd.f32 %v2428, 1.0
        %v2433 = vmul.f32 %v2417, %v2429
        %v2434 = vmul.f32 %v2418, %v2430
        %v2435 = vmul.f32 %v2419, %v2431
        %v2436 = vmul.f32 %v2420, %v2432
        %v2437 = vpack.c.bf16 %v2435, %v2433
        %v2438 = vpack.c.bf16 %v2436, %v2434
        %v2439 = vld [vmem:[%s12] sm:$0xf]
        %v2440 = vld [vmem:[%s12 + $0x4] sm:$0xf]
        %v2441 = vld [vmem:[%s12 + $0x8] sm:$0xf]
        %v2442 = vld [vmem:[%s12 + $0xc] sm:$0xf]
        %v2443 = vld [vmem:[%s12 + $0x10] sm:$0xf]
        %v2444 = vld [vmem:[%s12 + $0x14] sm:$0xf]
        %v2445 = vld [vmem:[%s12 + $0x18] sm:$0xf]
        %v2446 = vld [vmem:[%s12 + $0x1c] sm:$0xf]
        %v2447 = vld [vmem:[%s12 + $0x20] sm:$0xf]
        %v2448 = vld [vmem:[%s12 + $0x24] sm:$0xf]
        %v2449 = vld [vmem:[%s12 + $0x28] sm:$0xf]
        %v2450 = vld [vmem:[%s12 + $0x2c] sm:$0xf]
        %v2451 = vld [vmem:[%s12 + $0x30] sm:$0xf]
        %v2452 = vld [vmem:[%s12 + $0x34] sm:$0xf]
        %v2453 = vld [vmem:[%s12 + $0x38] sm:$0xf]
        %v2454 = vld [vmem:[%s12 + $0x3c] sm:$0xf]
        %v2455 = vld [vmem:[%s12 + $0x40] sm:$0xf]
        %v2456 = vld [vmem:[%s12 + $0x44] sm:$0xf]
        %v2457 = vld [vmem:[%s12 + $0x48] sm:$0xf]
        %v2458 = vld [vmem:[%s12 + $0x4c] sm:$0xf]
        %v2459 = vld [vmem:[%s12 + $0x50] sm:$0xf]
        %v2460 = vld [vmem:[%s12 + $0x54] sm:$0xf]
        %v2461 = vld [vmem:[%s12 + $0x58] sm:$0xf]
        %v2462 = vld [vmem:[%s12 + $0x5c] sm:$0xf]
        %v2463 = vld [vmem:[%s12 + $0x60] sm:$0xf]
        %v2464 = vld [vmem:[%s12 + $0x64] sm:$0xf]
        %v2465 = vld [vmem:[%s12 + $0x68] sm:$0xf]
        %v2466 = vld [vmem:[%s12 + $0x6c] sm:$0xf]
        %v2467 = vld [vmem:[%s12 + $0x70] sm:$0xf]
        %v2468 = vld [vmem:[%s12 + $0x74] sm:$0xf]
        %v2469 = vld [vmem:[%s12 + $0x78] sm:$0xf]
        %v2470 = vld [vmem:[%s12 + $0x7c] sm:$0xf]
        %v2471 = vld [vmem:[%s13] sm:$0x1]
        %v2473 = vlaneseq
        %v2474 = vshrl.u32 %v2473, 7
        %v2475 = vsub.s32 0, %v2474
        %v2476 = vrot.slane %v2471, %v2475
        %v2510 = vunpack.c.l.b16 %v2439
        %v2511 = vunpack.c.l.b16 %v2440
        %v2512 = vunpack.c.l.b16 %v2441
        %v2513 = vunpack.c.l.b16 %v2442
        %v2514 = vunpack.c.l.b16 %v2443
        %v2515 = vunpack.c.l.b16 %v2444
        %v2516 = vunpack.c.l.b16 %v2445
        %v2517 = vunpack.c.l.b16 %v2446
        %v2518 = vunpack.c.l.b16 %v2447
        %v2519 = vunpack.c.l.b16 %v2448
        %v2520 = vunpack.c.l.b16 %v2449
        %v2521 = vunpack.c.l.b16 %v2450
        %v2522 = vunpack.c.l.b16 %v2451
        %v2523 = vunpack.c.l.b16 %v2452
        %v2524 = vunpack.c.l.b16 %v2453
        %v2525 = vunpack.c.l.b16 %v2454
        %v2526 = vunpack.c.l.b16 %v2455
        %v2527 = vunpack.c.l.b16 %v2456
        %v2528 = vunpack.c.l.b16 %v2457
        %v2529 = vunpack.c.l.b16 %v2458
        %v2530 = vunpack.c.l.b16 %v2459
        %v2531 = vunpack.c.l.b16 %v2460
        %v2532 = vunpack.c.l.b16 %v2461
        %v2533 = vunpack.c.l.b16 %v2462
        %v2534 = vunpack.c.l.b16 %v2463
        %v2535 = vunpack.c.l.b16 %v2464
        %v2536 = vunpack.c.l.b16 %v2465
        %v2537 = vunpack.c.l.b16 %v2466
        %v2538 = vunpack.c.l.b16 %v2467
        %v2539 = vunpack.c.l.b16 %v2468
        %v2540 = vunpack.c.l.b16 %v2469
        %v2541 = vunpack.c.l.b16 %v2470
        %v2542 = vpack.c.b16 %v2511, %v2510
        %v2543 = vpack.c.b16 %v2513, %v2512
        %v2544 = vpack.c.b16 %v2515, %v2514
        %v2545 = vpack.c.b16 %v2517, %v2516
        %v2546 = vpack.c.b16 %v2519, %v2518
        %v2547 = vpack.c.b16 %v2521, %v2520
        %v2548 = vpack.c.b16 %v2523, %v2522
        %v2549 = vpack.c.b16 %v2525, %v2524
        %v2550 = vpack.c.b16 %v2527, %v2526
        %v2551 = vpack.c.b16 %v2529, %v2528
        %v2552 = vpack.c.b16 %v2531, %v2530
        %v2553 = vpack.c.b16 %v2533, %v2532
        %v2554 = vpack.c.b16 %v2535, %v2534
        %v2555 = vpack.c.b16 %v2537, %v2536
        %v2556 = vpack.c.b16 %v2539, %v2538
        %v2557 = vpack.c.b16 %v2541, %v2540
        %2574 = vmatprep.subr.bf16.mxu0 0
        %2575 = vmatpush1.bf16.msra.mxu0 %v2549
        %2576 = vmatprep.subr.bf16.mxu0 0
        %2577 = vmatpush1.bf16.msra.mxu0 %v2548
        %2578 = vmatprep.subr.bf16.mxu0 0
        %2579 = vmatpush1.bf16.msra.mxu0 %v2547
        %2580 = vmatprep.subr.bf16.mxu0 0
        %2581 = vmatpush1.bf16.msra.mxu0 %v2546
        %2582 = vmatprep.subr.bf16.mxu0 0
        %2583 = vmatpush1.bf16.msra.mxu0 %v2545
        %2584 = vmatprep.subr.bf16.mxu0 0
        %2585 = vmatpush1.bf16.msra.mxu0 %v2544
        %2586 = vmatprep.subr.bf16.mxu0 0
        %2587 = vmatpush1.bf16.msra.mxu0 %v2543
        %2588 = vmatprep.subr.bf16.mxu0 0
        %2589 = vmatpush1.bf16.msra.mxu0 %v2542
        %2590 = vmatprep.subr.bf16.mxu0 0
        %2591 = vmatpush2.bf16.msra.mxu0 %v2557
        %2592 = vmatprep.subr.bf16.mxu0 0
        %2593 = vmatpush2.bf16.msra.mxu0 %v2556
        %2594 = vmatprep.subr.bf16.mxu0 0
        %2595 = vmatpush2.bf16.msra.mxu0 %v2555
        %2596 = vmatprep.subr.bf16.mxu0 0
        %2597 = vmatpush2.bf16.msra.mxu0 %v2554
        %2598 = vmatprep.subr.bf16.mxu0 0
        %2599 = vmatpush2.bf16.msra.mxu0 %v2553
        %2600 = vmatprep.subr.bf16.mxu0 0
        %2601 = vmatpush2.bf16.msra.mxu0 %v2552
        %2602 = vmatprep.subr.bf16.mxu0 0
        %2603 = vmatpush2.bf16.msra.mxu0 %v2551
        %2604 = vmatprep.subr.bf16.mxu0 0
        %2605 = vmatpush2.bf16.msra.mxu0 %v2550
        %2606 = vmatprep.mubr.bf16.mxu0 %v2438
        %2607 = vmatmul.mubr.bf16.gmra.mxu0 %v2437
        %v2608 = vpop.f32.mrf.mxu0
        %v2609 = vadd.f32 %v2476, %v2608
        %v2610 = vpop.f32.mrf.mxu0
        %v2611 = vpop.f32.mrf.mxu0
        %v2612 = vadd.f32 %v2476, %v2611
        %v2613 = vpop.f32.mrf.mxu0
        %2614 = vdwg.mxu0
        %v2615 = vadd.f32 %v2264, %v2609
        %v2616 = vadd.f32 %v2265, %v2612
        %2617 = vst.msk [vmem:[%s460] sm:$0xff] %vm469, %v2615
        %2618 = vst.msk [vmem:[%s460 + $0x8] sm:$0xff] %vm469, %v2616
        %s2619 = sand.u32 %s335, 1
        %s2620 = scalar_lea.sflag [#allocation3], %s2619
        %s2621 = sand.u32 %s335, 1
        %s2622 = smul.addr %s2621, 16
        %s2623 = scalar_lea.vmem [#allocation2], %s2622
        // Predicated region
        $region77: #{tpu_custom_call.1} parent=75 // pred_check
          %p2624 = pneg %p345
        $region78: #{tpu_custom_call.1} parent=75 // pred_check_branch
          %2626 = sbr.rel (%p2624) target = $region80
        $region79: #{tpu_custom_call.1} parent=75 // pred_region
          %s2628 = ssub.s32 256, 256
          %2629 = vsyncadd %s2620, %s2628
          %s2630 = smul.addr %s28, 2
          %s2631 = smul.addr %s2630, 128
          %s2632 = scalar_lea.hbm %s14, %s2631
          %s2633 = sshll.u32 %s2623, 4
          %s2634 = int_to_ptr.vmem [resolvable:$true] %s2633
          %2639 = dma.vmem_to_hbm [thread:$0]  %s2634, 256, %s2632, %s2620, 128, 128, 8
        $region80: #{tpu_custom_call.1} parent=75 // pred_fallthru
          _
      $region76: #{tpu_custom_call.1} parent=5 // pred_fallthru
        _
      %p2640 = scmp.le.s32.totalorder 2, %s23
      // Predicated region
      $region81: #{tpu_custom_call.1} parent=5 // pred_check
        %p2641 = pneg %p2640
      $region82: #{tpu_custom_call.1} parent=5 // pred_check_branch
        %2643 = sbr.rel (%p2641) target = $region84
      $region83: #{tpu_custom_call.1} parent=5 // pred_region
        %s2644 = ssub.s32 %s23, 2
        // Predicated region
        $region85: #{tpu_custom_call.1} parent=83 // pred_check
          %p2645 = pneg %p351
        $region86: #{tpu_custom_call.1} parent=83 // pred_check_branch
          %2647 = sbr.rel (%p2645) target = $region88
        $region87: #{tpu_custom_call.1} parent=83 // pred_region
          %s2648 = sand.u32 %s336, 1
          %s2649 = scalar_lea.sflag [#allocation3], %s2648
          %s2650 = sand.u32 %s336, 1
          %s2651 = smul.addr %s2650, 16
          %s2652 = scalar_lea.vmem [#allocation2], %s2651
          %2653 = dma.done %s2649, 256
        $region88: #{tpu_custom_call.1} parent=83 // pred_fallthru
          _
      $region84: #{tpu_custom_call.1} parent=5 // pred_fallthru
        _
    $region6: #{tpu_custom_call.1} parent=1 // loop_footer
      %s27 = sadd.s32 1, %s23
    $region7: #{tpu_custom_call.1} parent=1 // loop_footer_branch
      %22 = sbr.rel target = $region3
    $region8: #{tpu_custom_call.1} parent=1 // loop_exit
      _
    %2654 = vsyncpa [#allocation3], 1
    %s2655 = scalar_lea.sflag [#allocation3], 1
    %2656 = vsyncpa %s2655, 1

</llo_original>
